<compile_context>
chip_gen: v6e
topology: v6e:2x2x1
jax: 0.10.0
libtpu: 0.0.40
codegen_flags: <defaults>
</compile_context>

<pallas_src>
import functools

import jax
import jax.numpy as jnp
from jax.experimental import pallas as pl
from jax.experimental.pallas import tpu as pltpu

_LANE = 128


def _round_up(x, m):
    return ((x + m - 1) // m) * m


# ----------------------------------------------------------------------------
# Pallas kernel 1: tiled matmul (fused conv0+conv1 as im2col, packed qkv projection)
#   bf16 operands, f32 accumulation, lane-dense output (N % 128 == 0).
# ----------------------------------------------------------------------------
def _matmul_kernel(a_ref, b_ref, o_ref):
    o_ref[...] = jnp.dot(a_ref[...], b_ref[...], preferred_element_type=jnp.float32)


def matmul_pallas(a, b):
    """(M,K) @ (K,N) -> (M,N) f32.  N must be a multiple of 128 (lane-dense stores)."""
    M, K = a.shape
    K2, N = b.shape
    assert K == K2
    assert N % _LANE == 0, "pad weight output columns to a multiple of 128"
    a = a.astype(jnp.bfloat16)
    b = b.astype(jnp.bfloat16)
    # M tile: prefer >= 2 grid steps (keeps both v7x TensorCores busy), tiles multiple of 8.
    tm = M
    for cand in (512, 256, 128, 64, 32, 16, 8):
        if M % cand == 0 and M // cand >= 2:
            tm = cand
            break
    return pl.pallas_call(
        _matmul_kernel,
        out_shape=jax.ShapeDtypeStruct((M, N), jnp.float32),
        grid=(M // tm,),
        in_specs=[
            pl.BlockSpec((tm, K), lambda i: (i, 0)),
            pl.BlockSpec((K, N), lambda i: (0, 0)),
        ],
        out_specs=pl.BlockSpec((tm, N), lambda i: (i, 0)),
        compiler_params=pltpu.CompilerParams(
            dimension_semantics=("parallel",),
            vmem_limit_bytes=32 * 1024 * 1024,
        ),
    )(a, b)


# ----------------------------------------------------------------------------
# Pallas kernel 2: axial self-attention core, per batch element, E on the lane axis.
#   q, k : (D, A) f32      (the torch "view" tensors; no q_perm materialization)
#   vT,xT: (A, E)          (vT bf16, xT f32; E = C*H*W/axis is the lane-dense dim)
#   s    = q^T @ k                          (A, A)   [dot_general contracting dim 0]
#   attn = softmax(s, axis=-1)              (A, A)   f32, EUP reciprocal
#   outT = attn @ vT                        (A, E)   bf16 MXU, f32 accumulate
#   oT   = gamma * outT + xT                (A, E)   full-width stores
# ----------------------------------------------------------------------------
def _axial_attn_kernel(g_ref, q_ref, k_ref, vt_ref, xt_ref, o_ref):
    s = jax.lax.dot_general(
        q_ref[...], k_ref[...], (((0,), (0,)), ((), ())),
        preferred_element_type=jnp.float32,
    )                                                      # (A, A) == q^T @ k
    s = s - jnp.max(s, axis=-1, keepdims=True)
    e = jnp.exp(s)
    attn = e * pl.reciprocal(jnp.sum(e, axis=-1, keepdims=True), approx=True)
    out_t = jnp.dot(attn.astype(vt_ref.dtype), vt_ref[...],
                    preferred_element_type=jnp.float32)    # (A, E) lane-dense
    o_ref[...] = g_ref[0] * out_t + xt_ref[...]


def axial_attn_pallas(q_view, k_view, v_t, x_t, gamma):
    B, D, A = q_view.shape
    E = v_t.shape[2]
    g = jnp.reshape(jnp.asarray(gamma, jnp.float32), (1,))
    return pl.pallas_call(
        _axial_attn_kernel,
        out_shape=jax.ShapeDtypeStruct((B, A, E), jnp.float32),
        grid=(B,),
        in_specs=[
            pl.BlockSpec(memory_space=pltpu.MemorySpace.SMEM),      # gamma scalar
            pl.BlockSpec((None, D, A), lambda b: (b, 0, 0)),
            pl.BlockSpec((None, D, A), lambda b: (b, 0, 0)),
            pl.BlockSpec((None, A, E), lambda b: (b, 0, 0)),
            pl.BlockSpec((None, A, E), lambda b: (b, 0, 0)),
        ],
        out_specs=pl.BlockSpec((None, A, E), lambda b: (b, 0, 0)),
        compiler_params=pltpu.CompilerParams(
            dimension_semantics=("parallel",),
            vmem_limit_bytes=32 * 1024 * 1024,
        ),
    )(g,
      q_view.astype(jnp.float32),
      k_view.astype(jnp.float32),
      v_t.astype(jnp.bfloat16),
      x_t.astype(jnp.float32))


# ----------------------------------------------------------------------------
# self_attn module (mode 'h' or 'w' chooses the attended axis length)
# ----------------------------------------------------------------------------
def self_attn_apply(x_nchw, p, axis_len):
    B, C, H, W = x_nchw.shape
    C8 = C // 8
    A = axis_len

    x_pix = jnp.transpose(x_nchw, (0, 2, 3, 1)).reshape(B * H * W, C)
    # fused, lane-dense q|k|v projection: one Pallas matmul into a 128-wide slab
    qkv = matmul_pallas(x_pix, p["wqkv_pad"])              # (B*H*W, 128)
    q_pix = qkv[:, :C8]
    k_pix = qkv[:, C8:2 * C8]
    v_pix = qkv[:, 2 * C8:2 * C8 + C]

    def nchw_view(t_pix, ch):
        # exact replication of torch: conv_out.view(B, -1, axis_len) on a contiguous NCHW tensor
        t_nchw = jnp.transpose(t_pix.reshape(B, H, W, ch), (0, 3, 1, 2))
        return t_nchw.reshape(B, -1, A)

    q_view = nchw_view(q_pix, C8)                          # (B, D, A)
    k_view = nchw_view(k_pix, C8)                          # (B, D, A)
    v_t = jnp.transpose(nchw_view(v_pix, C), (0, 2, 1))    # (B, A, E)  E = C*H*W/A
    x_t = jnp.transpose(x_nchw.reshape(B, -1, A), (0, 2, 1))  # residual, (B, A, E)

    out_t = axial_attn_pallas(q_view, k_view, v_t, x_t, p["gamma"])   # (B, A, E)
    out_view = jnp.transpose(out_t, (0, 2, 1))             # (B, E, A) == torch out.view layout
    return out_view.reshape(B, C, H, W)


# ----------------------------------------------------------------------------
# AA_kernel forward
# ----------------------------------------------------------------------------
@functools.partial(jax.jit, static_argnames=("out_channel",))
def aa_kernel_forward(x_nchw, kparams, *, out_channel):
    B, Cin, H, W = x_nchw.shape
    C = out_channel

    # conv0(1x1) fused into conv1(3x3): im2col on the *input* (9*Cin cols) + one lane-dense matmul
    # TODO(synk): for large resolutions move the 3x3 halo/im2col into the kernel (shifted-accumulate).
    x_nhwc = jnp.transpose(x_nchw, (0, 2, 3, 1))
    xpad = jnp.pad(x_nhwc, ((0, 0), (1, 1), (1, 1), (0, 0)))
    cols = [xpad[:, dy:dy + H, dx:dx + W, :] for dy in range(3) for dx in range(3)]
    xcol = jnp.concatenate(cols, axis=-1).reshape(B * H * W, 9 * Cin)
    y1 = matmul_pallas(xcol, kparams["w_conv_pad"])[:, :C]            # (B*H*W, C)
    y1_nchw = jnp.transpose(y1.reshape(B, H, W, C), (0, 3, 1, 2))

    # Hattn (axis = H) then Wattn (axis = W)
    hx = self_attn_apply(y1_nchw, kparams["hattn"], axis_len=H)
    wx = self_attn_apply(hx, kparams["wattn"], axis_len=W)
    return wx


# ----------------------------------------------------------------------------
# Parameter preparation: fuse conv0 into conv1, pack+pad q/k/v weights to 128 lanes
# ----------------------------------------------------------------------------
def prepare_params(params, in_channel):
    Cin = in_channel
    C = params["w0"].shape[1]
    hp = jax.lax.Precision.HIGHEST

    w1r = params["w1"].reshape(9, C, C)                    # (tap, c_mid, c_out)
    w_fused = jnp.einsum("ic,tco->tio", params["w0"], w1r, precision=hp).reshape(9 * Cin, C)
    npad_c = max(_LANE, _round_up(C, _LANE))
    w_conv_pad = jnp.zeros((9 * Cin, npad_c), jnp.float32).at[:, :C].set(w_fused)

    def attn_pack(p):
        wqkv = jnp.concatenate([p["wq"], p["wk"], p["wv"]], axis=1)   # (C, 2*C8 + C)
        npad = max(_LANE, _round_up(wqkv.shape[1], _LANE))
        wqkv_pad = jnp.zeros((C, npad), jnp.float32).at[:, :wqkv.shape[1]].set(wqkv)
        return {"wqkv_pad": wqkv_pad, "gamma": jnp.asarray(p["gamma"], jnp.float32)}

    return {
        "w_conv_pad": w_conv_pad,
        "hattn": attn_pack(params["hattn"]),
        "wattn": attn_pack(params["wattn"]),
    }


# ----------------------------------------------------------------------------
# Pure-JAX f32 reference (unfused, HIGHEST precision) for a correctness check
# ----------------------------------------------------------------------------
def reference_forward(x_nchw, params):
    hp = jax.lax.Precision.HIGHEST
    B, Cin, H, W = x_nchw.shape
    C = params["w0"].shape[1]
    x_pix = jnp.transpose(x_nchw, (0, 2, 3, 1)).reshape(B * H * W, Cin)
    y0 = jnp.dot(x_pix, params["w0"], precision=hp)
    y0_nhwc = y0.reshape(B, H, W, C)
    xpad = jnp.pad(y0_nhwc, ((0, 0), (1, 1), (1, 1), (0, 0)))
    cols = [xpad[:, dy:dy + H, dx:dx + W, :] for dy in range(3) for dx in range(3)]
    xcol = jnp.concatenate(cols, axis=-1).reshape(B * H * W, 9 * C)
    y1 = jnp.dot(xcol, params["w1"], precision=hp)
    y1_nchw = jnp.transpose(y1.reshape(B, H, W, C), (0, 3, 1, 2))

    def attn(x_n, p, axis_len):
        B_, C_, H_, W_ = x_n.shape
        xp = jnp.transpose(x_n, (0, 2, 3, 1)).reshape(B_ * H_ * W_, C_)
        q = jnp.dot(xp, p["wq"], precision=hp)
        k = jnp.dot(xp, p["wk"], precision=hp)
        v = jnp.dot(xp, p["wv"], precision=hp)

        def view(t, ch):
            return jnp.transpose(t.reshape(B_, H_, W_, ch), (0, 3, 1, 2)).reshape(B_, -1, axis_len)

        qv, kv, vv = view(q, p["wq"].shape[1]), view(k, p["wk"].shape[1]), view(v, C_)
        xv = x_n.reshape(B_, -1, axis_len)
        s = jnp.einsum("bij,bjk->bik", jnp.transpose(qv, (0, 2, 1)), kv, precision=hp)
        a = jax.nn.softmax(s, axis=-1)
        out = jnp.einsum("bej,bij->bei", vv, a, precision=hp)
        return (p["gamma"] * out + xv).reshape(B_, C_, H_, W_)

    hx = attn(y1_nchw, params["hattn"], H)
    wx = attn(hx, params["wattn"], W)
    return wx


# ----------------------------------------------------------------------------
# Deterministic parameter init (shapes from the module's __init__)
# ----------------------------------------------------------------------------
def make_params(key, in_channel, out_channel):
    C, Cin = out_channel, in_channel
    C8 = C // 8
    ks = jax.random.split(key, 8)
    # NOTE: torch inits gamma to 0 (identity attention); nonzero gammas exercise the attention path.
    return {
        "w0": 0.10 * jax.random.normal(ks[0], (Cin, C), jnp.float32),       # conv0 1x1 (Cin -> C)
        "w1": 0.05 * jax.random.normal(ks[1], (9 * C, C), jnp.float32),     # conv1 3x3 flattened (tap-major)
        "hattn": {
            "wq": 0.10 * jax.random.normal(ks[2], (C, C8), jnp.float32),
            "wk": 0.10 * jax.random.normal(ks[3], (C, C8), jnp.float32),
            "wv": 0.10 * jax.random.normal(ks[4], (C, C), jnp.float32),
            "gamma": jnp.float32(0.3),
        },
        "wattn": {
            "wq": 0.10 * jax.random.normal(ks[5], (C, C8), jnp.float32),
            "wk": 0.10 * jax.random.normal(ks[6], (C, C8), jnp.float32),
            "wv": 0.10 * jax.random.normal(ks[7], (C, C), jnp.float32),
            "gamma": jnp.float32(0.7),
        },
    }


if __name__ == "__main__":
    key = jax.random.PRNGKey(0)
    k_params, k_x = jax.random.split(key)

    B, Cin, C, H, W = 2, 4, 32, 16, 16
    params = make_params(k_params, in_channel=Cin, out_channel=C)
    kparams = prepare_params(params, in_channel=Cin)
    x = jax.random.normal(k_x, (B, Cin, H, W), jnp.float32)   # NCHW, like PyTorch

    out = aa_kernel_forward(x, kparams, out_channel=C)
    out = jax.block_until_ready(out)
    assert out.shape == (B, C, H, W) and out.dtype == jnp.float32

    ref = jax.block_until_ready(reference_forward(x, params))
    max_err = float(jnp.max(jnp.abs(out - ref)))
    # bf16 MXU operands with f32 accumulation: keep a bf16-appropriate tolerance.
    assert max_err < 2e-2, f"mismatch vs reference: max abs err = {max_err}"

    print("KERNEL_OK")
</pallas_src>

<mosaic_0001>
module attributes {stable_mosaic.version = 11 : i64} {
  func.func @_matmul_kernel(%arg0: i32, %arg1: memref<256x36xbf16, #tpu.memory_space<vmem>>, %arg2: memref<36x128xbf16, #tpu.memory_space<vmem>>, %arg3: memref<256x128xf32, #tpu.memory_space<vmem>>) attributes {dimension_semantics = [#tpu.dimension_semantics<parallel>], iteration_bounds = array<i64: 2>, scalar_prefetch = 0 : i64, scratch_operands = 0 : i64, tpu.core_type = #tpu.core_type<tc>, window_params = [{transform_indices = @transform_0, window_bounds = array<i64: 256, 36>}, {pipeline_mode = #tpu.pipeline_mode<synchronous>, transform_indices = @transform_1, window_bounds = array<i64: 36, 128>}, {transform_indices = @transform_2, window_bounds = array<i64: 256, 128>}]} {
    %c0 = arith.constant 0 : index
    %c0_0 = arith.constant 0 : index
    %0 = vector.load %arg1[%c0, %c0_0] : memref<256x36xbf16, #tpu.memory_space<vmem>>, vector<256x36xbf16>
    %c0_1 = arith.constant 0 : index
    %c0_2 = arith.constant 0 : index
    %1 = vector.load %arg2[%c0_1, %c0_2] : memref<36x128xbf16, #tpu.memory_space<vmem>>, vector<36x128xbf16>
    %cst = arith.constant dense<0.000000e+00> : vector<256x128xf32>
    %2 = tpu.matmul %0, %1, %cst {dimension_numbers = #tpu.dot_dimension_numbers<[1], [0], [0], [1], [0, 0, 1, 1], [], []>} : vector<256x36xbf16>, vector<36x128xbf16>, vector<256x128xf32> -> vector<256x128xf32>
    %c0_3 = arith.constant 0 : index
    %c0_4 = arith.constant 0 : index
    %3 = vector.load %arg3[%c0_3, %c0_4] : memref<256x128xf32, #tpu.memory_space<vmem>>, vector<256x128xf32>
    tpu.vector_store %arg3[%c0_3, %c0_4], %2 {strides = array<i32>} : memref<256x128xf32, #tpu.memory_space<vmem>>, vector<256x128xf32>,
    return
  }
  func.func @transform_0(%arg0: i32) -> (i32, i32) {
    %c0_i32 = arith.constant 0 : i32
    %c0_i32_0 = arith.constant 0 : i32
    return %arg0, %c0_i32 : i32, i32
  }
  func.func @transform_1(%arg0: i32) -> (i32, i32) {
    %c0_i32 = arith.constant 0 : i32
    %c0_i32_0 = arith.constant 0 : i32
    %c0_i32_1 = arith.constant 0 : i32
    return %c0_i32, %c0_i32_0 : i32, i32
  }
  func.func @transform_2(%arg0: i32) -> (i32, i32) {
    %c0_i32 = arith.constant 0 : i32
    %c0_i32_0 = arith.constant 0 : i32
    return %arg0, %c0_i32 : i32, i32
  }
}

module attributes {stable_mosaic.version = 11 : i64} {
  func.func @_matmul_kernel(%arg0: i32, %arg1: memref<256x32xbf16, #tpu.memory_space<vmem>>, %arg2: memref<32x128xbf16, #tpu.memory_space<vmem>>, %arg3: memref<256x128xf32, #tpu.memory_space<vmem>>) attributes {dimension_semantics = [#tpu.dimension_semantics<parallel>], iteration_bounds = array<i64: 2>, scalar_prefetch = 0 : i64, scratch_operands = 0 : i64, tpu.core_type = #tpu.core_type<tc>, window_params = [{transform_indices = @transform_0, window_bounds = array<i64: 256, 32>}, {pipeline_mode = #tpu.pipeline_mode<synchronous>, transform_indices = @transform_1, window_bounds = array<i64: 32, 128>}, {transform_indices = @transform_2, window_bounds = array<i64: 256, 128>}]} {
    %c0 = arith.constant 0 : index
    %c0_0 = arith.constant 0 : index
    %0 = vector.load %arg1[%c0, %c0_0] : memref<256x32xbf16, #tpu.memory_space<vmem>>, vector<256x32xbf16>
    %c0_1 = arith.constant 0 : index
    %c0_2 = arith.constant 0 : index
    %1 = vector.load %arg2[%c0_1, %c0_2] : memref<32x128xbf16, #tpu.memory_space<vmem>>, vector<32x128xbf16>
    %cst = arith.constant dense<0.000000e+00> : vector<256x128xf32>
    %2 = tpu.matmul %0, %1, %cst {dimension_numbers = #tpu.dot_dimension_numbers<[1], [0], [0], [1], [0, 0, 1, 1], [], []>} : vector<256x32xbf16>, vector<32x128xbf16>, vector<256x128xf32> -> vector<256x128xf32>
    %c0_3 = arith.constant 0 : index
    %c0_4 = arith.constant 0 : index
    %3 = vector.load %arg3[%c0_3, %c0_4] : memref<256x128xf32, #tpu.memory_space<vmem>>, vector<256x128xf32>
    tpu.vector_store %arg3[%c0_3, %c0_4], %2 {strides = array<i32>} : memref<256x128xf32, #tpu.memory_space<vmem>>, vector<256x128xf32>,
    return
  }
  func.func @transform_0(%arg0: i32) -> (i32, i32) {
    %c0_i32 = arith.constant 0 : i32
    %c0_i32_0 = arith.constant 0 : i32
    return %arg0, %c0_i32 : i32, i32
  }
  func.func @transform_1(%arg0: i32) -> (i32, i32) {
    %c0_i32 = arith.constant 0 : i32
    %c0_i32_0 = arith.constant 0 : i32
    %c0_i32_1 = arith.constant 0 : i32
    return %c0_i32, %c0_i32_0 : i32, i32
  }
  func.func @transform_2(%arg0: i32) -> (i32, i32) {
    %c0_i32 = arith.constant 0 : i32
    %c0_i32_0 = arith.constant 0 : i32
    return %arg0, %c0_i32 : i32, i32
  }
}

module attributes {stable_mosaic.version = 11 : i64} {
  func.func @_axial_attn_kernel(%arg0: i32, %arg1: memref<1xf32, #tpu.memory_space<smem>>, %arg2: memref<1x64x16xf32, #tpu.memory_space<vmem>>, %arg3: memref<1x64x16xf32, #tpu.memory_space<vmem>>, %arg4: memref<1x16x512xbf16, #tpu.memory_space<vmem>>, %arg5: memref<1x16x512xf32, #tpu.memory_space<vmem>>, %arg6: memref<1x16x512xf32, #tpu.memory_space<vmem>>) attributes {dimension_semantics = [#tpu.dimension_semantics<parallel>], iteration_bounds = array<i64: 2>, scalar_prefetch = 0 : i64, scratch_operands = 0 : i64, tpu.core_type = #tpu.core_type<tc>, window_params = [{transform_indices = @transform_0, window_bounds = array<i64: 1>}, {transform_indices = @transform_1, window_bounds = array<i64: 1, 64, 16>}, {transform_indices = @transform_2, window_bounds = array<i64: 1, 64, 16>}, {transform_indices = @transform_3, window_bounds = array<i64: 1, 16, 512>}, {transform_indices = @transform_4, window_bounds = array<i64: 1, 16, 512>}, {transform_indices = @transform_5, window_bounds = array<i64: 1, 16, 512>}]} {
    %c0 = arith.constant 0 : index
    %c0_0 = arith.constant 0 : index
    %c0_1 = arith.constant 0 : index
    %0 = vector.load %arg2[%c0, %c0_0, %c0_1] : memref<1x64x16xf32, #tpu.memory_space<vmem>>, vector<1x64x16xf32>
    %1 = vector.shape_cast %0 : vector<1x64x16xf32> to vector<64x16xf32>
    %c0_2 = arith.constant 0 : index
    %c0_3 = arith.constant 0 : index
    %c0_4 = arith.constant 0 : index
    %2 = vector.load %arg3[%c0_2, %c0_3, %c0_4] : memref<1x64x16xf32, #tpu.memory_space<vmem>>, vector<1x64x16xf32>
    %3 = vector.shape_cast %2 : vector<1x64x16xf32> to vector<64x16xf32>
    %cst = arith.constant dense<0.000000e+00> : vector<16x16xf32>
    %4 = tpu.matmul %1, %3, %cst {dimension_numbers = #tpu.dot_dimension_numbers<[0], [0], [1], [1], [0, 1, 1, 1], [], []>} : vector<64x16xf32>, vector<64x16xf32>, vector<16x16xf32> -> vector<16x16xf32>
    %cst_5 = arith.constant dense<0xFF800000> : vector<16xf32>
    %5 = vector.multi_reduction <maximumf>, %4, %cst_5 [1] : vector<16x16xf32> to vector<16xf32>
    %6 = vector.shape_cast %5 : vector<16xf32> to vector<16x1xf32>
    %7 = vector.broadcast %6 : vector<16x1xf32> to vector<16x16xf32>
    %8 = arith.subf %4, %7 : vector<16x16xf32>
    %9 = math.exp %8 : vector<16x16xf32>
    %cst_6 = arith.constant dense<0.000000e+00> : vector<16xf32>
    %10 = vector.multi_reduction <add>, %9, %cst_6 [1] : vector<16x16xf32> to vector<16xf32>
    %11 = vector.shape_cast %10 : vector<16xf32> to vector<16x1xf32>
    %12 = tpu.reciprocal %11 {approx = true} : vector<16x1xf32> -> vector<16x1xf32>
    %13 = vector.broadcast %12 : vector<16x1xf32> to vector<16x16xf32>
    %14 = arith.mulf %9, %13 : vector<16x16xf32>
    %15 = arith.truncf %14 : vector<16x16xf32> to vector<16x16xbf16>
    %c0_7 = arith.constant 0 : index
    %c0_8 = arith.constant 0 : index
    %c0_9 = arith.constant 0 : index
    %16 = vector.load %arg4[%c0_7, %c0_8, %c0_9] : memref<1x16x512xbf16, #tpu.memory_space<vmem>>, vector<1x16x512xbf16>
    %17 = vector.shape_cast %16 : vector<1x16x512xbf16> to vector<16x512xbf16>
    %cst_10 = arith.constant dense<0.000000e+00> : vector<16x512xf32>
    %18 = tpu.matmul %15, %17, %cst_10 {dimension_numbers = #tpu.dot_dimension_numbers<[1], [0], [0], [1], [0, 0, 1, 1], [], []>} : vector<16x16xbf16>, vector<16x512xbf16>, vector<16x512xf32> -> vector<16x512xf32>
    %c0_11 = arith.constant 0 : index
    %19 = memref.load %arg1[%c0_11] : memref<1xf32, #tpu.memory_space<smem>>
    %20 = vector.broadcast %19 : f32 to vector<16x512xf32>
    %21 = arith.mulf %20, %18 : vector<16x512xf32>
    %c0_12 = arith.constant 0 : index
    %c0_13 = arith.constant 0 : index
    %c0_14 = arith.constant 0 : index
    %22 = vector.load %arg5[%c0_12, %c0_13, %c0_14] : memref<1x16x512xf32, #tpu.memory_space<vmem>>, vector<1x16x512xf32>
    %23 = vector.shape_cast %22 : vector<1x16x512xf32> to vector<16x512xf32>
    %24 = arith.addf %21, %23 : vector<16x512xf32>
    %c0_15 = arith.constant 0 : index
    %c0_16 = arith.constant 0 : index
    %c0_17 = arith.constant 0 : index
    %25 = vector.load %arg6[%c0_15, %c0_16, %c0_17] : memref<1x16x512xf32, #tpu.memory_space<vmem>>, vector<1x16x512xf32>
    %26 = vector.shape_cast %25 : vector<1x16x512xf32> to vector<16x512xf32>
    %27 = vector.shape_cast %24 : vector<16x512xf32> to vector<1x16x512xf32>
    tpu.vector_store %arg6[%c0_15, %c0_16, %c0_17], %27 {strides = array<i32>} : memref<1x16x512xf32, #tpu.memory_space<vmem>>, vector<1x16x512xf32>,
    return
  }
  func.func @transform_0(%arg0: i32) -> i32 {
    %c0_i32 = arith.constant 0 : i32
    %c0_i32_0 = arith.constant 0 : i32
    return %c0_i32 : i32
  }
  func.func @transform_1(%arg0: i32) -> (i32, i32, i32) {
    %c0_i32 = arith.constant 0 : i32
    %c0_i32_0 = arith.constant 0 : i32
    %c0_i32_1 = arith.constant 0 : i32
    return %arg0, %c0_i32, %c0_i32_0 : i32, i32, i32
  }
  func.func @transform_2(%arg0: i32) -> (i32, i32, i32) {
    %c0_i32 = arith.constant 0 : i32
    %c0_i32_0 = arith.constant 0 : i32
    %c0_i32_1 = arith.constant 0 : i32
    return %arg0, %c0_i32, %c0_i32_0 : i32, i32, i32
  }
  func.func @transform_3(%arg0: i32) -> (i32, i32, i32) {
    %c0_i32 = arith.constant 0 : i32
    %c0_i32_0 = arith.constant 0 : i32
    %c0_i32_1 = arith.constant 0 : i32
    return %arg0, %c0_i32, %c0_i32_0 : i32, i32, i32
  }
  func.func @transform_4(%arg0: i32) -> (i32, i32, i32) {
    %c0_i32 = arith.constant 0 : i32
    %c0_i32_0 = arith.constant 0 : i32
    %c0_i32_1 = arith.constant 0 : i32
    return %arg0, %c0_i32, %c0_i32_0 : i32, i32, i32
  }
  func.func @transform_5(%arg0: i32) -> (i32, i32, i32) {
    %c0_i32 = arith.constant 0 : i32
    %c0_i32_0 = arith.constant 0 : i32
    %c0_i32_1 = arith.constant 0 : i32
    return %arg0, %c0_i32, %c0_i32_0 : i32, i32, i32
  }
}

</mosaic_0001>

<llo_original>
// kernel: aa_kernel_forward.6
$region0: #{aa_kernel_forward.6}
  #allocation0 [shape = 'u32[]', space=smem, size = 0x4, offset = 0x4, fixed_abs, tag = 'smem constant byte address 0x4 - core index']
  #allocation1 [shape = 'u32[144,128]{1,0:T(1,128)}', space=vmem, size = 0x12000, scoped, tag = 'internal scratch']
  %s0 = inlined_call_operand.vmem [shape: bf16[512,32], index: 0, kind: input, shape index: {}]
  %s1 = inlined_call_operand.vmem [shape: bf16[32,128], index: 1, kind: input, shape index: {}]
  %s2 = inlined_call_operand.vmem [shape: f32[512,128], index: 2, kind: output, shape index: {}]
  %s3 = sld [smem:[#allocation0]]
  $region41: #{aa_kernel_forward.6} parent=0
    _
  %s5 = ssub.s32 1, %s3
  %s6 = scalar_select 0, %s5, %s3
  loop: start=0, step=1, limit=4
  $region2: #{aa_kernel_forward.6} parent=0 // loop_pre_header
    _
  $region3: #{aa_kernel_forward.6} parent=0 // loop_header
    %s8 = sphi 0, %s12
    %p9 = scmp.ge.s32.totalorder %s8, 4
    %s18 = sphi 0, %s20
    %s21 = sphi 0, %s18
    %s22 = sphi 0, %s21
    %s38 = sphi 0, %s22
    %s42 = sphi 0, %s42
    %s44 = sphi 0, %s42
    %s45 = sphi 0, %s44
    %s59 = sphi 0, %s45
    %s65 = sphi 0, %s67
    %s68 = sphi 0, %s65
    %s69 = sphi 0, %s68
    %s85 = sphi 0, %s69
  $region4: #{aa_kernel_forward.6} parent=0 // loop_header_branch
    %11 = sbr.rel (%p9) target = $region8
  $region5: #{aa_kernel_forward.6} parent=0 // loop_body
    %s13 = ssub.s32 %s8, 1
    %s14 = ssub.s32 %s8, 2
    %s15 = sadd.s32 %s8, 1
    %s16 = ssub.s32 %s8, %s15
    %p17 = scmp.eq.s32.totalorder %s16, 0
    %s19 = sadd.s32 %s18, 1
    %s20 = scalar_select %p17, %s18, %s19
    %p23 = pneg %p17
    %p24 = scmp.eq.s32.totalorder %s8, 1
    %p25 = por %p23, %p24
    %p26 = scmp.ne.s32.totalorder %s18, %s21
    %p27 = scmp.eq.s32.totalorder %s8, 0
    %p28 = por %p26, %p27
    %p29 = scmp.ne.s32.totalorder %s18, %s21
    %p30 = scmp.eq.s32.totalorder %s13, 1
    %p31 = por %p29, %p30
    %p32 = scmp.ne.s32.totalorder %s21, %s22
    %p33 = scmp.eq.s32.totalorder %s13, 0
    %p34 = por %p32, %p33
    %p35 = scmp.ne.s32.totalorder %s21, %s22
    %p36 = scmp.eq.s32.totalorder %s14, 1
    %p37 = por %p35, %p36
    %p39 = scmp.ne.s32.totalorder %s22, %s38
    %p40 = scmp.eq.s32.totalorder %s14, 0
    %p41 = por %p39, %p40
    %s43 = sadd.s32 %s42, 1
    %p46 = scmp.eq.s32.totalorder %s8, 1
    %p47 = scmp.ne.s32.totalorder %s42, %s44
    %p48 = scmp.eq.s32.totalorder %s8, 0
    %p49 = por %p47, %p48
    %p50 = scmp.ne.s32.totalorder %s42, %s44
    %p51 = scmp.eq.s32.totalorder %s13, 1
    %p52 = por %p50, %p51
    %p53 = scmp.ne.s32.totalorder %s44, %s45
    %p54 = scmp.eq.s32.totalorder %s13, 0
    %p55 = por %p53, %p54
    %p56 = scmp.ne.s32.totalorder %s44, %s45
    %p57 = scmp.eq.s32.totalorder %s14, 1
    %p58 = por %p56, %p57
    %p60 = scmp.ne.s32.totalorder %s45, %s59
    %p61 = scmp.eq.s32.totalorder %s14, 0
    %p62 = por %p60, %p61
    %s63 = ssub.s32 %s8, %s15
    %p64 = scmp.eq.s32.totalorder %s63, 0
    %s66 = sadd.s32 %s65, 1
    %s67 = scalar_select %p64, %s65, %s66
    %p70 = pneg %p64
    %p71 = scmp.eq.s32.totalorder %s8, 1
    %p72 = por %p70, %p71
    %p73 = scmp.ne.s32.totalorder %s65, %s68
    %p74 = scmp.eq.s32.totalorder %s8, 0
    %p75 = por %p73, %p74
    %p76 = scmp.ne.s32.totalorder %s65, %s68
    %p77 = scmp.eq.s32.totalorder %s13, 1
    %p78 = por %p76, %p77
    %p79 = scmp.ne.s32.totalorder %s68, %s69
    %p80 = scmp.eq.s32.totalorder %s13, 0
    %p81 = por %p79, %p80
    %p82 = scmp.ne.s32.totalorder %s68, %s69
    %p83 = scmp.eq.s32.totalorder %s14, 1
    %p84 = por %p82, %p83
    %p86 = scmp.ne.s32.totalorder %s69, %s85
    %p87 = scmp.eq.s32.totalorder %s14, 0
    %p88 = por %p86, %p87
    %p89 = scmp.le.s32.totalorder 1, %s8
    %p90 = scmp.lt.s32.totalorder %s8, 3
    %p91 = pnand %p89, %p90
    %p92 = pneg %p91
    // Predicated region
    $region9: #{aa_kernel_forward.6} parent=5 // pred_check
      _
    $region10: #{aa_kernel_forward.6} parent=5 // pred_check_branch
      %94 = sbr.rel (%p91) target = $region12
    $region11: #{aa_kernel_forward.6} parent=5 // pred_region
      %s95 = ssub.s32 %s8, 1
      // Predicated region
      $region13: #{aa_kernel_forward.6} parent=11 // pred_check
        %p96 = pneg %p55
      $region14: #{aa_kernel_forward.6} parent=11 // pred_check_branch
        %98 = sbr.rel (%p96) target = $region16
      $region15: #{aa_kernel_forward.6} parent=11 // pred_region
        _
      $region16: #{aa_kernel_forward.6} parent=11 // pred_fallthru
        _
    $region12: #{aa_kernel_forward.6} parent=5 // pred_fallthru
      _
    %p99 = scmp.lt.s32.totalorder %s8, 2
    // Predicated region
    $region17: #{aa_kernel_forward.6} parent=5 // pred_check
      %p100 = pneg %p99
    $region18: #{aa_kernel_forward.6} parent=5 // pred_check_branch
      %102 = sbr.rel (%p100) target = $region20
    $region19: #{aa_kernel_forward.6} parent=5 // pred_region
      // Predicated region
      $region21: #{aa_kernel_forward.6} parent=19 // pred_check
        %p103 = pneg %p28
      $region22: #{aa_kernel_forward.6} parent=19 // pred_check_branch
        %105 = sbr.rel (%p103) target = $region24
      $region23: #{aa_kernel_forward.6} parent=19 // pred_region
        %s106 = smul.u32 32, %s8
        %p107 = scmp.lt.s32.totalorder %s106, 63
        %s108 = scalar_select %p107, %s106, 63
        %s109 = smul.addr %s108, 4
        %s110 = scalar_lea.vmem %s0, %s109
        %s111 = smul.u32 32, %s8
      $region24: #{aa_kernel_forward.6} parent=19 // pred_fallthru
        _
    $region20: #{aa_kernel_forward.6} parent=5 // pred_fallthru
      _
    %p112 = scmp.le.s32.totalorder 1, %s8
    %p113 = scmp.lt.s32.totalorder %s8, 3
    %p114 = pnand %p112, %p113
    %p115 = pneg %p114
    // Predicated region
    $region25: #{aa_kernel_forward.6} parent=5 // pred_check
      _
    $region26: #{aa_kernel_forward.6} parent=5 // pred_check_branch
      %117 = sbr.rel (%p114) target = $region28
    $region27: #{aa_kernel_forward.6} parent=5 // pred_region
      %s118 = ssub.s32 %s8, 1
      %s119 = smul.u32 32, %s13
      %p120 = scmp.lt.s32.totalorder %s119, 63
      %s121 = scalar_select %p120, %s119, 63
      %s122 = smul.addr %s121, 4
      %s123 = scalar_lea.vmem %s0, %s122
      %p124 = pneg %p34
      %p125 = pneg %p31
      %p126 = pneg %p55
      %p127 = pneg %p52
      %p128 = pneg %p81
      %p129 = pneg %p78
      %s130 = smul.u32 32, %s13
      %p131 = scmp.lt.s32.totalorder %s130, 63
      %s132 = scalar_select %p131, %s130, 63
      %s133 = smul.addr %s132, 8
      %s134 = scalar_lea.vmem %s2, %s133
      %s135 = smul.u32 32, %s13
      %p136 = scmp.lt.s32.totalorder %s135, 63
      %s137 = scalar_select %p136, %s135, 63
      %s138 = smul.addr %s137, 4
      %s139 = scalar_lea.vmem %s0, %s138
      %s140 = smul.u32 32, %s13
      %s141 = smul.u32 32, %s13
      %p142 = scmp.lt.s32.totalorder %s141, 63
      %s143 = scalar_select %p142, %s141, 63
      %s144 = smul.addr %s143, 8
      %s145 = scalar_lea.vmem %s2, %s144
      %s146 = smul.u32 32, %s13
      %v148 = vld [vmem:[%s139] sm:$0xf]
      %v149 = vld [vmem:[%s139 + $0x4] sm:$0xf]
      %v150 = vld [vmem:[%s139 + $0x8] sm:$0xf]
      %v151 = vld [vmem:[%s139 + $0xc] sm:$0xf]
      %v152 = vld [vmem:[%s139 + $0x10] sm:$0xf]
      %v153 = vld [vmem:[%s139 + $0x14] sm:$0xf]
      %v154 = vld [vmem:[%s139 + $0x18] sm:$0xf]
      %v155 = vld [vmem:[%s139 + $0x1c] sm:$0xf]
      %v156 = vld [vmem:[%s139 + $0x20] sm:$0xf]
      %v157 = vld [vmem:[%s139 + $0x24] sm:$0xf]
      %v158 = vld [vmem:[%s139 + $0x28] sm:$0xf]
      %v159 = vld [vmem:[%s139 + $0x2c] sm:$0xf]
      %v160 = vld [vmem:[%s139 + $0x30] sm:$0xf]
      %v161 = vld [vmem:[%s139 + $0x34] sm:$0xf]
      %v162 = vld [vmem:[%s139 + $0x38] sm:$0xf]
      %v163 = vld [vmem:[%s139 + $0x3c] sm:$0xf]
      %v164 = vld [vmem:[%s139 + $0x40] sm:$0xf]
      %v165 = vld [vmem:[%s139 + $0x44] sm:$0xf]
      %v166 = vld [vmem:[%s139 + $0x48] sm:$0xf]
      %v167 = vld [vmem:[%s139 + $0x4c] sm:$0xf]
      %v168 = vld [vmem:[%s139 + $0x50] sm:$0xf]
      %v169 = vld [vmem:[%s139 + $0x54] sm:$0xf]
      %v170 = vld [vmem:[%s139 + $0x58] sm:$0xf]
      %v171 = vld [vmem:[%s139 + $0x5c] sm:$0xf]
      %v172 = vld [vmem:[%s139 + $0x60] sm:$0xf]
      %v173 = vld [vmem:[%s139 + $0x64] sm:$0xf]
      %v174 = vld [vmem:[%s139 + $0x68] sm:$0xf]
      %v175 = vld [vmem:[%s139 + $0x6c] sm:$0xf]
      %v176 = vld [vmem:[%s139 + $0x70] sm:$0xf]
      %v177 = vld [vmem:[%s139 + $0x74] sm:$0xf]
      %v178 = vld [vmem:[%s139 + $0x78] sm:$0xf]
      %v179 = vld [vmem:[%s139 + $0x7c] sm:$0xf]
      %v180 = vld [vmem:[%s1] sm:$0xf]
      %v181 = vld [vmem:[%s1 + $0x4] sm:$0xf]
      %v182 = vld [vmem:[%s1 + $0x8] sm:$0xf]
      %v183 = vld [vmem:[%s1 + $0xc] sm:$0xf]
      %v216 = vunpack.c.l.b16 %v148
      %v217 = vunpack.c.l.b16 %v149
      %v218 = vunpack.c.l.b16 %v150
      %v219 = vunpack.c.l.b16 %v151
      %v220 = vunpack.c.l.b16 %v152
      %v221 = vunpack.c.l.b16 %v153
      %v222 = vunpack.c.l.b16 %v154
      %v223 = vunpack.c.l.b16 %v155
      %v224 = vunpack.c.l.b16 %v156
      %v225 = vunpack.c.l.b16 %v157
      %v226 = vunpack.c.l.b16 %v158
      %v227 = vunpack.c.l.b16 %v159
      %v228 = vunpack.c.l.b16 %v160
      %v229 = vunpack.c.l.b16 %v161
      %v230 = vunpack.c.l.b16 %v162
      %v231 = vunpack.c.l.b16 %v163
      %v232 = vunpack.c.l.b16 %v164
      %v233 = vunpack.c.l.b16 %v165
      %v234 = vunpack.c.l.b16 %v166
      %v235 = vunpack.c.l.b16 %v167
      %v236 = vunpack.c.l.b16 %v168
      %v237 = vunpack.c.l.b16 %v169
      %v238 = vunpack.c.l.b16 %v170
      %v239 = vunpack.c.l.b16 %v171
      %v240 = vunpack.c.l.b16 %v172
      %v241 = vunpack.c.l.b16 %v173
      %v242 = vunpack.c.l.b16 %v174
      %v243 = vunpack.c.l.b16 %v175
      %v244 = vunpack.c.l.b16 %v176
      %v245 = vunpack.c.l.b16 %v177
      %v246 = vunpack.c.l.b16 %v178
      %v247 = vunpack.c.l.b16 %v179
      %v248 = vpack.c.b16 %v217, %v216
      %v249 = vpack.c.b16 %v219, %v218
      %v250 = vpack.c.b16 %v221, %v220
      %v251 = vpack.c.b16 %v223, %v222
      %v252 = vpack.c.b16 %v225, %v224
      %v253 = vpack.c.b16 %v227, %v226
      %v254 = vpack.c.b16 %v229, %v228
      %v255 = vpack.c.b16 %v231, %v230
      %v256 = vpack.c.b16 %v233, %v232
      %v257 = vpack.c.b16 %v235, %v234
      %v258 = vpack.c.b16 %v237, %v236
      %v259 = vpack.c.b16 %v239, %v238
      %v260 = vpack.c.b16 %v241, %v240
      %v261 = vpack.c.b16 %v243, %v242
      %v262 = vpack.c.b16 %v245, %v244
      %v263 = vpack.c.b16 %v247, %v246
      %v268 = vunpack.c.l.b16 %v180
      %v269 = vunpack.c.l.b16 %v181
      %v270 = vunpack.c.l.b16 %v182
      %v271 = vunpack.c.l.b16 %v183
      %v272 = vpack.c.b16 %v269, %v268
      %v273 = vpack.c.b16 %v271, %v270
      %vm276 = vcmask 261120
      %v278 = vsel %vm276, %v248, 0
      %v281 = vsel %vm276, %v249, 0
      %v284 = vsel %vm276, %v250, 0
      %v287 = vsel %vm276, %v251, 0
      %v290 = vsel %vm276, %v252, 0
      %v293 = vsel %vm276, %v253, 0
      %v296 = vsel %vm276, %v254, 0
      %v299 = vsel %vm276, %v255, 0
      %v302 = vsel %vm276, %v256, 0
      %v305 = vsel %vm276, %v257, 0
      %v308 = vsel %vm276, %v258, 0
      %v311 = vsel %vm276, %v259, 0
      %v314 = vsel %vm276, %v260, 0
      %v317 = vsel %vm276, %v261, 0
      %v320 = vsel %vm276, %v262, 0
      %v323 = vsel %vm276, %v263, 0
      %325 = vmatprep.subr.bf16.mxu0 0
      %326 = vmatpush1.bf16.msra.mxu0 0
      %327 = vmatprep.subr.bf16.mxu0 0
      %328 = vmatpush1.bf16.msra.mxu0 0
      %329 = vmatprep.subr.bf16.mxu0 0
      %330 = vmatpush1.bf16.msra.mxu0 0
      %331 = vmatprep.subr.bf16.mxu0 0
      %332 = vmatpush1.bf16.msra.mxu0 0
      %333 = vmatprep.subr.bf16.mxu0 0
      %334 = vmatpush1.bf16.msra.mxu0 0
      %335 = vmatprep.subr.bf16.mxu0 0
      %336 = vmatpush1.bf16.msra.mxu0 0
      %337 = vmatprep.subr.bf16.mxu0 0
      %338 = vmatpush1.bf16.msra.mxu0 %v273
      %339 = vmatprep.subr.bf16.mxu0 0
      %340 = vmatpush1.bf16.msra.mxu0 %v272
      %341 = vmatprep.subr.bf16.mxu0 0
      %342 = vmatpush2.bf16.msra.mxu0 0
      %343 = vmatprep.subr.bf16.mxu0 0
      %344 = vmatpush2.bf16.msra.mxu0 0
      %345 = vmatprep.subr.bf16.mxu0 0
      %346 = vmatpush2.bf16.msra.mxu0 0
      %347 = vmatprep.subr.bf16.mxu0 0
      %348 = vmatpush2.bf16.msra.mxu0 0
      %349 = vmatprep.subr.bf16.mxu0 0
      %350 = vmatpush2.bf16.msra.mxu0 0
      %351 = vmatprep.subr.bf16.mxu0 0
      %352 = vmatpush2.bf16.msra.mxu0 0
      %353 = vmatprep.subr.bf16.mxu0 0
      %354 = vmatpush2.bf16.msra.mxu0 0
      %355 = vmatprep.subr.bf16.mxu0 0
      %356 = vmatpush2.bf16.msra.mxu0 0
      %357 = vmatprep.mubr.bf16.mxu0 0
      %358 = vmatmul.mubr.bf16.gmra.mxu0 %v278
      %v359 = vpop.f32.mrf.mxu0
      %v360 = vadd.f32 0.0, %v359
      %v361 = vpop.f32.mrf.mxu0
      %v362 = vpop.f32.mrf.mxu0
      %v363 = vadd.f32 0.0, %v362
      %v364 = vpop.f32.mrf.mxu0
      %365 = vmatprep.mubr.bf16.mxu0 0
      %366 = vmatmul.mubr.bf16.gmra.mxu0 %v281
      %v367 = vpop.f32.mrf.mxu0
      %v368 = vadd.f32 0.0, %v367
      %v369 = vpop.f32.mrf.mxu0
      %v370 = vpop.f32.mrf.mxu0
      %v371 = vadd.f32 0.0, %v370
      %v372 = vpop.f32.mrf.mxu0
      %373 = vmatprep.mubr.bf16.mxu0 0
      %374 = vmatmul.mubr.bf16.gmra.mxu0 %v284
      %v375 = vpop.f32.mrf.mxu0
      %v376 = vadd.f32 0.0, %v375
      %v377 = vpop.f32.mrf.mxu0
      %v378 = vpop.f32.mrf.mxu0
      %v379 = vadd.f32 0.0, %v378
      %v380 = vpop.f32.mrf.mxu0
      %381 = vmatprep.mubr.bf16.mxu0 0
      %382 = vmatmul.mubr.bf16.gmra.mxu0 %v287
      %v383 = vpop.f32.mrf.mxu0
      %v384 = vadd.f32 0.0, %v383
      %v385 = vpop.f32.mrf.mxu0
      %v386 = vpop.f32.mrf.mxu0
      %v387 = vadd.f32 0.0, %v386
      %v388 = vpop.f32.mrf.mxu0
      %389 = vmatprep.mubr.bf16.mxu0 0
      %390 = vmatmul.mubr.bf16.gmra.mxu0 %v290
      %v391 = vpop.f32.mrf.mxu0
      %v392 = vadd.f32 0.0, %v391
      %v393 = vpop.f32.mrf.mxu0
      %v394 = vpop.f32.mrf.mxu0
      %v395 = vadd.f32 0.0, %v394
      %v396 = vpop.f32.mrf.mxu0
      %397 = vmatprep.mubr.bf16.mxu0 0
      %398 = vmatmul.mubr.bf16.gmra.mxu0 %v293
      %v399 = vpop.f32.mrf.mxu0
      %v400 = vadd.f32 0.0, %v399
      %v401 = vpop.f32.mrf.mxu0
      %v402 = vpop.f32.mrf.mxu0
      %v403 = vadd.f32 0.0, %v402
      %v404 = vpop.f32.mrf.mxu0
      %405 = vmatprep.mubr.bf16.mxu0 0
      %406 = vmatmul.mubr.bf16.gmra.mxu0 %v296
      %v407 = vpop.f32.mrf.mxu0
      %v408 = vadd.f32 0.0, %v407
      %v409 = vpop.f32.mrf.mxu0
      %v410 = vpop.f32.mrf.mxu0
      %v411 = vadd.f32 0.0, %v410
      %v412 = vpop.f32.mrf.mxu0
      %413 = vmatprep.mubr.bf16.mxu0 0
      %414 = vmatmul.mubr.bf16.gmra.mxu0 %v299
      %v415 = vpop.f32.mrf.mxu0
      %v416 = vadd.f32 0.0, %v415
      %v417 = vpop.f32.mrf.mxu0
      %v418 = vpop.f32.mrf.mxu0
      %v419 = vadd.f32 0.0, %v418
      %v420 = vpop.f32.mrf.mxu0
      %421 = vmatprep.mubr.bf16.mxu0 0
      %422 = vmatmul.mubr.bf16.gmra.mxu0 %v302
      %v423 = vpop.f32.mrf.mxu0
      %v424 = vadd.f32 0.0, %v423
      %v425 = vpop.f32.mrf.mxu0
      %v426 = vpop.f32.mrf.mxu0
      %v427 = vadd.f32 0.0, %v426
      %v428 = vpop.f32.mrf.mxu0
      %429 = vmatprep.mubr.bf16.mxu0 0
      %430 = vmatmul.mubr.bf16.gmra.mxu0 %v305
      %v431 = vpop.f32.mrf.mxu0
      %v432 = vadd.f32 0.0, %v431
      %v433 = vpop.f32.mrf.mxu0
      %v434 = vpop.f32.mrf.mxu0
      %v435 = vadd.f32 0.0, %v434
      %v436 = vpop.f32.mrf.mxu0
      %437 = vmatprep.mubr.bf16.mxu0 0
      %438 = vmatmul.mubr.bf16.gmra.mxu0 %v308
      %v439 = vpop.f32.mrf.mxu0
      %v440 = vadd.f32 0.0, %v439
      %v441 = vpop.f32.mrf.mxu0
      %v442 = vpop.f32.mrf.mxu0
      %v443 = vadd.f32 0.0, %v442
      %v444 = vpop.f32.mrf.mxu0
      %445 = vmatprep.mubr.bf16.mxu0 0
      %446 = vmatmul.mubr.bf16.gmra.mxu0 %v311
      %v447 = vpop.f32.mrf.mxu0
      %v448 = vadd.f32 0.0, %v447
      %v449 = vpop.f32.mrf.mxu0
      %v450 = vpop.f32.mrf.mxu0
      %v451 = vadd.f32 0.0, %v450
      %v452 = vpop.f32.mrf.mxu0
      %453 = vmatprep.mubr.bf16.mxu0 0
      %454 = vmatmul.mubr.bf16.gmra.mxu0 %v314
      %v455 = vpop.f32.mrf.mxu0
      %v456 = vadd.f32 0.0, %v455
      %v457 = vpop.f32.mrf.mxu0
      %v458 = vpop.f32.mrf.mxu0
      %v459 = vadd.f32 0.0, %v458
      %v460 = vpop.f32.mrf.mxu0
      %461 = vmatprep.mubr.bf16.mxu0 0
      %462 = vmatmul.mubr.bf16.gmra.mxu0 %v317
      %v463 = vpop.f32.mrf.mxu0
      %v464 = vadd.f32 0.0, %v463
      %v465 = vpop.f32.mrf.mxu0
      %v466 = vpop.f32.mrf.mxu0
      %v467 = vadd.f32 0.0, %v466
      %v468 = vpop.f32.mrf.mxu0
      %469 = vmatprep.mubr.bf16.mxu0 0
      %470 = vmatmul.mubr.bf16.gmra.mxu0 %v320
      %v471 = vpop.f32.mrf.mxu0
      %v472 = vadd.f32 0.0, %v471
      %v473 = vpop.f32.mrf.mxu0
      %v474 = vpop.f32.mrf.mxu0
      %v475 = vadd.f32 0.0, %v474
      %v476 = vpop.f32.mrf.mxu0
      %477 = vmatprep.mubr.bf16.mxu0 0
      %478 = vmatmul.mubr.bf16.gmra.mxu0 %v323
      %v479 = vpop.f32.mrf.mxu0
      %v480 = vadd.f32 0.0, %v479
      %v481 = vpop.f32.mrf.mxu0
      %v482 = vpop.f32.mrf.mxu0
      %v483 = vadd.f32 0.0, %v482
      %v484 = vpop.f32.mrf.mxu0
      %485 = vdwg.mxu0
      %486 = vst [vmem:[%s145] sm:$0xff] %v360
      %487 = vst [vmem:[%s145 + $0x8] sm:$0xff] %v363
      %488 = vst [vmem:[%s145 + $0x10] sm:$0xff] %v368
      %489 = vst [vmem:[%s145 + $0x18] sm:$0xff] %v371
      %490 = vst [vmem:[%s145 + $0x20] sm:$0xff] %v376
      %491 = vst [vmem:[%s145 + $0x28] sm:$0xff] %v379
      %492 = vst [vmem:[%s145 + $0x30] sm:$0xff] %v384
      %493 = vst [vmem:[%s145 + $0x38] sm:$0xff] %v387
      %494 = vst [vmem:[%s145 + $0x40] sm:$0xff] %v392
      %495 = vst [vmem:[%s145 + $0x48] sm:$0xff] %v395
      %496 = vst [vmem:[%s145 + $0x50] sm:$0xff] %v400
      %497 = vst [vmem:[%s145 + $0x58] sm:$0xff] %v403
      %498 = vst [vmem:[%s145 + $0x60] sm:$0xff] %v408
      %499 = vst [vmem:[%s145 + $0x68] sm:$0xff] %v411
      %500 = vst [vmem:[%s145 + $0x70] sm:$0xff] %v416
      %501 = vst [vmem:[%s145 + $0x78] sm:$0xff] %v419
      %502 = vst [vmem:[%s145 + $0x80] sm:$0xff] %v424
      %503 = vst [vmem:[%s145 + $0x88] sm:$0xff] %v427
      %504 = vst [vmem:[%s145 + $0x90] sm:$0xff] %v432
      %505 = vst [vmem:[%s145 + $0x98] sm:$0xff] %v435
      %506 = vst [vmem:[%s145 + $0xa0] sm:$0xff] %v440
      %507 = vst [vmem:[%s145 + $0xa8] sm:$0xff] %v443
      %508 = vst [vmem:[%s145 + $0xb0] sm:$0xff] %v448
      %509 = vst [vmem:[%s145 + $0xb8] sm:$0xff] %v451
      %510 = vst [vmem:[%s145 + $0xc0] sm:$0xff] %v456
      %511 = vst [vmem:[%s145 + $0xc8] sm:$0xff] %v459
      %512 = vst [vmem:[%s145 + $0xd0] sm:$0xff] %v464
      %513 = vst [vmem:[%s145 + $0xd8] sm:$0xff] %v467
      %514 = vst [vmem:[%s145 + $0xe0] sm:$0xff] %v472
      %515 = vst [vmem:[%s145 + $0xe8] sm:$0xff] %v475
      %516 = vst [vmem:[%s145 + $0xf0] sm:$0xff] %v480
      %517 = vst [vmem:[%s145 + $0xf8] sm:$0xff] %v483
      %s518 = smul.u32 32, %s13
      %p519 = scmp.lt.s32.totalorder %s518, 63
      %s520 = scalar_select %p519, %s518, 63
      %s521 = smul.addr %s520, 8
      %s522 = scalar_lea.vmem %s2, %s521
      // Predicated region
      $region29: #{aa_kernel_forward.6} parent=27 // pred_check
        %p523 = pneg %p78
      $region30: #{aa_kernel_forward.6} parent=27 // pred_check_branch
        %525 = sbr.rel (%p523) target = $region32
      $region31: #{aa_kernel_forward.6} parent=27 // pred_region
        %s526 = smul.u32 32, %s13
      $region32: #{aa_kernel_forward.6} parent=27 // pred_fallthru
        _
    $region28: #{aa_kernel_forward.6} parent=5 // pred_fallthru
      _
    %p527 = scmp.le.s32.totalorder 2, %s8
    // Predicated region
    $region33: #{aa_kernel_forward.6} parent=5 // pred_check
      %p528 = pneg %p527
    $region34: #{aa_kernel_forward.6} parent=5 // pred_check_branch
      %530 = sbr.rel (%p528) target = $region36
    $region35: #{aa_kernel_forward.6} parent=5 // pred_region
      %s531 = ssub.s32 %s8, 2
      // Predicated region
      $region37: #{aa_kernel_forward.6} parent=35 // pred_check
        %p532 = pneg %p84
      $region38: #{aa_kernel_forward.6} parent=35 // pred_check_branch
        %534 = sbr.rel (%p532) target = $region40
      $region39: #{aa_kernel_forward.6} parent=35 // pred_region
        %s535 = smul.u32 32, %s14
        %p536 = scmp.lt.s32.totalorder %s535, 63
        %s537 = scalar_select %p536, %s535, 63
        %s538 = smul.addr %s537, 8
        %s539 = scalar_lea.vmem %s2, %s538
      $region40: #{aa_kernel_forward.6} parent=35 // pred_fallthru
        _
    $region36: #{aa_kernel_forward.6} parent=5 // pred_fallthru
      _
  $region6: #{aa_kernel_forward.6} parent=0 // loop_footer
    %s12 = sadd.s32 1, %s8
  $region7: #{aa_kernel_forward.6} parent=0 // loop_footer_branch
    %7 = sbr.rel target = $region3
  $region8: #{aa_kernel_forward.6} parent=0 // loop_exit
    _

// kernel: aa_kernel_forward.5
$region0: #{aa_kernel_forward.5}
  #allocation0 [shape = 'u32[]', space=smem, size = 0x4, offset = 0x4, fixed_abs, tag = 'smem constant byte address 0x4 - core index']
  #allocation1 [shape = 'u32[144,128]{1,0:T(1,128)}', space=vmem, size = 0x12000, scoped, tag = 'internal scratch']
  %s0 = inlined_call_operand.vmem [shape: bf16[512,36], index: 0, kind: input, shape index: {}]
  %s1 = inlined_call_operand.vmem [shape: bf16[36,128], index: 1, kind: input, shape index: {}]
  %s2 = inlined_call_operand.vmem [shape: f32[512,128], index: 2, kind: output, shape index: {}]
  %s3 = sld [smem:[#allocation0]]
  $region41: #{aa_kernel_forward.5} parent=0
    _
  %s5 = ssub.s32 1, %s3
  %s6 = scalar_select 0, %s5, %s3
  loop: start=0, step=1, limit=4
  $region2: #{aa_kernel_forward.5} parent=0 // loop_pre_header
    _
  $region3: #{aa_kernel_forward.5} parent=0 // loop_header
    %s8 = sphi 0, %s12
    %p9 = scmp.ge.s32.totalorder %s8, 4
    %s18 = sphi 0, %s20
    %s21 = sphi 0, %s18
    %s22 = sphi 0, %s21
    %s38 = sphi 0, %s22
    %s42 = sphi 0, %s42
    %s44 = sphi 0, %s42
    %s45 = sphi 0, %s44
    %s59 = sphi 0, %s45
    %s65 = sphi 0, %s67
    %s68 = sphi 0, %s65
    %s69 = sphi 0, %s68
    %s85 = sphi 0, %s69
  $region4: #{aa_kernel_forward.5} parent=0 // loop_header_branch
    %11 = sbr.rel (%p9) target = $region8
  $region5: #{aa_kernel_forward.5} parent=0 // loop_body
    %s13 = ssub.s32 %s8, 1
    %s14 = ssub.s32 %s8, 2
    %s15 = sadd.s32 %s8, 1
    %s16 = ssub.s32 %s8, %s15
    %p17 = scmp.eq.s32.totalorder %s16, 0
    %s19 = sadd.s32 %s18, 1
    %s20 = scalar_select %p17, %s18, %s19
    %p23 = pneg %p17
    %p24 = scmp.eq.s32.totalorder %s8, 1
    %p25 = por %p23, %p24
    %p26 = scmp.ne.s32.totalorder %s18, %s21
    %p27 = scmp.eq.s32.totalorder %s8, 0
    %p28 = por %p26, %p27
    %p29 = scmp.ne.s32.totalorder %s18, %s21
    %p30 = scmp.eq.s32.totalorder %s13, 1
    %p31 = por %p29, %p30
    %p32 = scmp.ne.s32.totalorder %s21, %s22
    %p33 = scmp.eq.s32.totalorder %s13, 0
    %p34 = por %p32, %p33
    %p35 = scmp.ne.s32.totalorder %s21, %s22
    %p36 = scmp.eq.s32.totalorder %s14, 1
    %p37 = por %p35, %p36
    %p39 = scmp.ne.s32.totalorder %s22, %s38
    %p40 = scmp.eq.s32.totalorder %s14, 0
    %p41 = por %p39, %p40
    %s43 = sadd.s32 %s42, 1
    %p46 = scmp.eq.s32.totalorder %s8, 1
    %p47 = scmp.ne.s32.totalorder %s42, %s44
    %p48 = scmp.eq.s32.totalorder %s8, 0
    %p49 = por %p47, %p48
    %p50 = scmp.ne.s32.totalorder %s42, %s44
    %p51 = scmp.eq.s32.totalorder %s13, 1
    %p52 = por %p50, %p51
    %p53 = scmp.ne.s32.totalorder %s44, %s45
    %p54 = scmp.eq.s32.totalorder %s13, 0
    %p55 = por %p53, %p54
    %p56 = scmp.ne.s32.totalorder %s44, %s45
    %p57 = scmp.eq.s32.totalorder %s14, 1
    %p58 = por %p56, %p57
    %p60 = scmp.ne.s32.totalorder %s45, %s59
    %p61 = scmp.eq.s32.totalorder %s14, 0
    %p62 = por %p60, %p61
    %s63 = ssub.s32 %s8, %s15
    %p64 = scmp.eq.s32.totalorder %s63, 0
    %s66 = sadd.s32 %s65, 1
    %s67 = scalar_select %p64, %s65, %s66
    %p70 = pneg %p64
    %p71 = scmp.eq.s32.totalorder %s8, 1
    %p72 = por %p70, %p71
    %p73 = scmp.ne.s32.totalorder %s65, %s68
    %p74 = scmp.eq.s32.totalorder %s8, 0
    %p75 = por %p73, %p74
    %p76 = scmp.ne.s32.totalorder %s65, %s68
    %p77 = scmp.eq.s32.totalorder %s13, 1
    %p78 = por %p76, %p77
    %p79 = scmp.ne.s32.totalorder %s68, %s69
    %p80 = scmp.eq.s32.totalorder %s13, 0
    %p81 = por %p79, %p80
    %p82 = scmp.ne.s32.totalorder %s68, %s69
    %p83 = scmp.eq.s32.totalorder %s14, 1
    %p84 = por %p82, %p83
    %p86 = scmp.ne.s32.totalorder %s69, %s85
    %p87 = scmp.eq.s32.totalorder %s14, 0
    %p88 = por %p86, %p87
    %p89 = scmp.le.s32.totalorder 1, %s8
    %p90 = scmp.lt.s32.totalorder %s8, 3
    %p91 = pnand %p89, %p90
    %p92 = pneg %p91
    // Predicated region
    $region9: #{aa_kernel_forward.5} parent=5 // pred_check
      _
    $region10: #{aa_kernel_forward.5} parent=5 // pred_check_branch
      %94 = sbr.rel (%p91) target = $region12
    $region11: #{aa_kernel_forward.5} parent=5 // pred_region
      %s95 = ssub.s32 %s8, 1
      // Predicated region
      $region13: #{aa_kernel_forward.5} parent=11 // pred_check
        %p96 = pneg %p55
      $region14: #{aa_kernel_forward.5} parent=11 // pred_check_branch
        %98 = sbr.rel (%p96) target = $region16
      $region15: #{aa_kernel_forward.5} parent=11 // pred_region
        _
      $region16: #{aa_kernel_forward.5} parent=11 // pred_fallthru
        _
    $region12: #{aa_kernel_forward.5} parent=5 // pred_fallthru
      _
    %p99 = scmp.lt.s32.totalorder %s8, 2
    // Predicated region
    $region17: #{aa_kernel_forward.5} parent=5 // pred_check
      %p100 = pneg %p99
    $region18: #{aa_kernel_forward.5} parent=5 // pred_check_branch
      %102 = sbr.rel (%p100) target = $region20
    $region19: #{aa_kernel_forward.5} parent=5 // pred_region
      // Predicated region
      $region21: #{aa_kernel_forward.5} parent=19 // pred_check
        %p103 = pneg %p28
      $region22: #{aa_kernel_forward.5} parent=19 // pred_check_branch
        %105 = sbr.rel (%p103) target = $region24
      $region23: #{aa_kernel_forward.5} parent=19 // pred_region
        %s106 = smul.u32 32, %s8
        %p107 = scmp.lt.s32.totalorder %s106, 63
        %s108 = scalar_select %p107, %s106, 63
        %s109 = smul.addr %s108, 4
        %s110 = scalar_lea.vmem %s0, %s109
        %s111 = smul.u32 32, %s8
      $region24: #{aa_kernel_forward.5} parent=19 // pred_fallthru
        _
    $region20: #{aa_kernel_forward.5} parent=5 // pred_fallthru
      _
    %p112 = scmp.le.s32.totalorder 1, %s8
    %p113 = scmp.lt.s32.totalorder %s8, 3
    %p114 = pnand %p112, %p113
    %p115 = pneg %p114
    // Predicated region
    $region25: #{aa_kernel_forward.5} parent=5 // pred_check
      _
    $region26: #{aa_kernel_forward.5} parent=5 // pred_check_branch
      %117 = sbr.rel (%p114) target = $region28
    $region27: #{aa_kernel_forward.5} parent=5 // pred_region
      %s118 = ssub.s32 %s8, 1
      %s119 = smul.u32 32, %s13
      %p120 = scmp.lt.s32.totalorder %s119, 63
      %s121 = scalar_select %p120, %s119, 63
      %s122 = smul.addr %s121, 4
      %s123 = scalar_lea.vmem %s0, %s122
      %p124 = pneg %p34
      %p125 = pneg %p31
      %p126 = pneg %p55
      %p127 = pneg %p52
      %p128 = pneg %p81
      %p129 = pneg %p78
      %s130 = smul.u32 32, %s13
      %p131 = scmp.lt.s32.totalorder %s130, 63
      %s132 = scalar_select %p131, %s130, 63
      %s133 = smul.addr %s132, 8
      %s134 = scalar_lea.vmem %s2, %s133
      %s135 = smul.u32 32, %s13
      %p136 = scmp.lt.s32.totalorder %s135, 63
      %s137 = scalar_select %p136, %s135, 63
      %s138 = smul.addr %s137, 4
      %s139 = scalar_lea.vmem %s0, %s138
      %s140 = smul.u32 32, %s13
      %s141 = smul.u32 32, %s13
      %p142 = scmp.lt.s32.totalorder %s141, 63
      %s143 = scalar_select %p142, %s141, 63
      %s144 = smul.addr %s143, 8
      %s145 = scalar_lea.vmem %s2, %s144
      %s146 = smul.u32 32, %s13
      %v148 = vld [vmem:[%s139] sm:$0xf]
      %v149 = vld [vmem:[%s139 + $0x4] sm:$0xf]
      %v150 = vld [vmem:[%s139 + $0x8] sm:$0xf]
      %v151 = vld [vmem:[%s139 + $0xc] sm:$0xf]
      %v152 = vld [vmem:[%s139 + $0x10] sm:$0xf]
      %v153 = vld [vmem:[%s139 + $0x14] sm:$0xf]
      %v154 = vld [vmem:[%s139 + $0x18] sm:$0xf]
      %v155 = vld [vmem:[%s139 + $0x1c] sm:$0xf]
      %v156 = vld [vmem:[%s139 + $0x20] sm:$0xf]
      %v157 = vld [vmem:[%s139 + $0x24] sm:$0xf]
      %v158 = vld [vmem:[%s139 + $0x28] sm:$0xf]
      %v159 = vld [vmem:[%s139 + $0x2c] sm:$0xf]
      %v160 = vld [vmem:[%s139 + $0x30] sm:$0xf]
      %v161 = vld [vmem:[%s139 + $0x34] sm:$0xf]
      %v162 = vld [vmem:[%s139 + $0x38] sm:$0xf]
      %v163 = vld [vmem:[%s139 + $0x3c] sm:$0xf]
      %v164 = vld [vmem:[%s139 + $0x40] sm:$0xf]
      %v165 = vld [vmem:[%s139 + $0x44] sm:$0xf]
      %v166 = vld [vmem:[%s139 + $0x48] sm:$0xf]
      %v167 = vld [vmem:[%s139 + $0x4c] sm:$0xf]
      %v168 = vld [vmem:[%s139 + $0x50] sm:$0xf]
      %v169 = vld [vmem:[%s139 + $0x54] sm:$0xf]
      %v170 = vld [vmem:[%s139 + $0x58] sm:$0xf]
      %v171 = vld [vmem:[%s139 + $0x5c] sm:$0xf]
      %v172 = vld [vmem:[%s139 + $0x60] sm:$0xf]
      %v173 = vld [vmem:[%s139 + $0x64] sm:$0xf]
      %v174 = vld [vmem:[%s139 + $0x68] sm:$0xf]
      %v175 = vld [vmem:[%s139 + $0x6c] sm:$0xf]
      %v176 = vld [vmem:[%s139 + $0x70] sm:$0xf]
      %v177 = vld [vmem:[%s139 + $0x74] sm:$0xf]
      %v178 = vld [vmem:[%s139 + $0x78] sm:$0xf]
      %v179 = vld [vmem:[%s139 + $0x7c] sm:$0xf]
      %v180 = vld [vmem:[%s1] sm:$0xf]
      %v181 = vld [vmem:[%s1 + $0x4] sm:$0xf]
      %v182 = vld [vmem:[%s1 + $0x8] sm:$0xf]
      %v183 = vld [vmem:[%s1 + $0xc] sm:$0xf]
      %v184 = vld [vmem:[%s1 + $0x10] sm:$0x3]
      %v217 = vunpack.c.l.b16 %v148
      %v218 = vunpack.c.l.b16 %v149
      %v219 = vunpack.c.l.b16 %v150
      %v220 = vunpack.c.l.b16 %v151
      %v221 = vunpack.c.l.b16 %v152
      %v222 = vunpack.c.l.b16 %v153
      %v223 = vunpack.c.l.b16 %v154
      %v224 = vunpack.c.l.b16 %v155
      %v225 = vunpack.c.l.b16 %v156
      %v226 = vunpack.c.l.b16 %v157
      %v227 = vunpack.c.l.b16 %v158
      %v228 = vunpack.c.l.b16 %v159
      %v229 = vunpack.c.l.b16 %v160
      %v230 = vunpack.c.l.b16 %v161
      %v231 = vunpack.c.l.b16 %v162
      %v232 = vunpack.c.l.b16 %v163
      %v233 = vunpack.c.l.b16 %v164
      %v234 = vunpack.c.l.b16 %v165
      %v235 = vunpack.c.l.b16 %v166
      %v236 = vunpack.c.l.b16 %v167
      %v237 = vunpack.c.l.b16 %v168
      %v238 = vunpack.c.l.b16 %v169
      %v239 = vunpack.c.l.b16 %v170
      %v240 = vunpack.c.l.b16 %v171
      %v241 = vunpack.c.l.b16 %v172
      %v242 = vunpack.c.l.b16 %v173
      %v243 = vunpack.c.l.b16 %v174
      %v244 = vunpack.c.l.b16 %v175
      %v245 = vunpack.c.l.b16 %v176
      %v246 = vunpack.c.l.b16 %v177
      %v247 = vunpack.c.l.b16 %v178
      %v248 = vunpack.c.l.b16 %v179
      %v249 = vpack.c.b16 %v218, %v217
      %v250 = vpack.c.b16 %v220, %v219
      %v251 = vpack.c.b16 %v222, %v221
      %v252 = vpack.c.b16 %v224, %v223
      %v253 = vpack.c.b16 %v226, %v225
      %v254 = vpack.c.b16 %v228, %v227
      %v255 = vpack.c.b16 %v230, %v229
      %v256 = vpack.c.b16 %v232, %v231
      %v257 = vpack.c.b16 %v234, %v233
      %v258 = vpack.c.b16 %v236, %v235
      %v259 = vpack.c.b16 %v238, %v237
      %v260 = vpack.c.b16 %v240, %v239
      %v261 = vpack.c.b16 %v242, %v241
      %v262 = vpack.c.b16 %v244, %v243
      %v263 = vpack.c.b16 %v246, %v245
      %v264 = vpack.c.b16 %v248, %v247
      %v270 = vunpack.c.l.b16 %v180
      %v271 = vunpack.c.l.b16 %v181
      %v272 = vunpack.c.l.b16 %v182
      %v273 = vunpack.c.l.b16 %v183
      %v274 = vunpack.c.l.b16 %v184
      %v275 = vpack.c.b16 %v271, %v270
      %v276 = vpack.c.b16 %v273, %v272
      %v277 = vpack.c.b16 %v274, %v274
      %vm280 = vcmask 293888
      %v282 = vsel %vm280, %v249, 0
      %v285 = vsel %vm280, %v250, 0
      %v288 = vsel %vm280, %v251, 0
      %v291 = vsel %vm280, %v252, 0
      %v294 = vsel %vm280, %v253, 0
      %v297 = vsel %vm280, %v254, 0
      %v300 = vsel %vm280, %v255, 0
      %v303 = vsel %vm280, %v256, 0
      %v306 = vsel %vm280, %v257, 0
      %v309 = vsel %vm280, %v258, 0
      %v312 = vsel %vm280, %v259, 0
      %v315 = vsel %vm280, %v260, 0
      %v318 = vsel %vm280, %v261, 0
      %v321 = vsel %vm280, %v262, 0
      %v324 = vsel %vm280, %v263, 0
      %v327 = vsel %vm280, %v264, 0
      %vm329 = vcmask 1041408
      %v331 = vsel %vm329, %v277, 0
      %333 = vmatprep.subr.bf16.mxu0 0
      %334 = vmatpush1.bf16.msra.mxu0 0
      %335 = vmatprep.subr.bf16.mxu0 0
      %336 = vmatpush1.bf16.msra.mxu0 0
      %337 = vmatprep.subr.bf16.mxu0 0
      %338 = vmatpush1.bf16.msra.mxu0 0
      %339 = vmatprep.subr.bf16.mxu0 0
      %340 = vmatpush1.bf16.msra.mxu0 0
      %341 = vmatprep.subr.bf16.mxu0 0
      %342 = vmatpush1.bf16.msra.mxu0 0
      %343 = vmatprep.subr.bf16.mxu0 0
      %344 = vmatpush1.bf16.msra.mxu0 %v331
      %345 = vmatprep.subr.bf16.mxu0 0
      %346 = vmatpush1.bf16.msra.mxu0 %v276
      %347 = vmatprep.subr.bf16.mxu0 0
      %348 = vmatpush1.bf16.msra.mxu0 %v275
      %349 = vmatprep.subr.bf16.mxu0 0
      %350 = vmatpush2.bf16.msra.mxu0 0
      %351 = vmatprep.subr.bf16.mxu0 0
      %352 = vmatpush2.bf16.msra.mxu0 0
      %353 = vmatprep.subr.bf16.mxu0 0
      %354 = vmatpush2.bf16.msra.mxu0 0
      %355 = vmatprep.subr.bf16.mxu0 0
      %356 = vmatpush2.bf16.msra.mxu0 0
      %357 = vmatprep.subr.bf16.mxu0 0
      %358 = vmatpush2.bf16.msra.mxu0 0
      %359 = vmatprep.subr.bf16.mxu0 0
      %360 = vmatpush2.bf16.msra.mxu0 0
      %361 = vmatprep.subr.bf16.mxu0 0
      %362 = vmatpush2.bf16.msra.mxu0 0
      %363 = vmatprep.subr.bf16.mxu0 0
      %364 = vmatpush2.bf16.msra.mxu0 0
      %365 = vmatprep.mubr.bf16.mxu0 0
      %366 = vmatmul.mubr.bf16.gmra.mxu0 %v282
      %v367 = vpop.f32.mrf.mxu0
      %v368 = vadd.f32 0.0, %v367
      %v369 = vpop.f32.mrf.mxu0
      %v370 = vpop.f32.mrf.mxu0
      %v371 = vadd.f32 0.0, %v370
      %v372 = vpop.f32.mrf.mxu0
      %373 = vmatprep.mubr.bf16.mxu0 0
      %374 = vmatmul.mubr.bf16.gmra.mxu0 %v285
      %v375 = vpop.f32.mrf.mxu0
      %v376 = vadd.f32 0.0, %v375
      %v377 = vpop.f32.mrf.mxu0
      %v378 = vpop.f32.mrf.mxu0
      %v379 = vadd.f32 0.0, %v378
      %v380 = vpop.f32.mrf.mxu0
      %381 = vmatprep.mubr.bf16.mxu0 0
      %382 = vmatmul.mubr.bf16.gmra.mxu0 %v288
      %v383 = vpop.f32.mrf.mxu0
      %v384 = vadd.f32 0.0, %v383
      %v385 = vpop.f32.mrf.mxu0
      %v386 = vpop.f32.mrf.mxu0
      %v387 = vadd.f32 0.0, %v386
      %v388 = vpop.f32.mrf.mxu0
      %389 = vmatprep.mubr.bf16.mxu0 0
      %390 = vmatmul.mubr.bf16.gmra.mxu0 %v291
      %v391 = vpop.f32.mrf.mxu0
      %v392 = vadd.f32 0.0, %v391
      %v393 = vpop.f32.mrf.mxu0
      %v394 = vpop.f32.mrf.mxu0
      %v395 = vadd.f32 0.0, %v394
      %v396 = vpop.f32.mrf.mxu0
      %397 = vmatprep.mubr.bf16.mxu0 0
      %398 = vmatmul.mubr.bf16.gmra.mxu0 %v294
      %v399 = vpop.f32.mrf.mxu0
      %v400 = vadd.f32 0.0, %v399
      %v401 = vpop.f32.mrf.mxu0
      %v402 = vpop.f32.mrf.mxu0
      %v403 = vadd.f32 0.0, %v402
      %v404 = vpop.f32.mrf.mxu0
      %405 = vmatprep.mubr.bf16.mxu0 0
      %406 = vmatmul.mubr.bf16.gmra.mxu0 %v297
      %v407 = vpop.f32.mrf.mxu0
      %v408 = vadd.f32 0.0, %v407
      %v409 = vpop.f32.mrf.mxu0
      %v410 = vpop.f32.mrf.mxu0
      %v411 = vadd.f32 0.0, %v410
      %v412 = vpop.f32.mrf.mxu0
      %413 = vmatprep.mubr.bf16.mxu0 0
      %414 = vmatmul.mubr.bf16.gmra.mxu0 %v300
      %v415 = vpop.f32.mrf.mxu0
      %v416 = vadd.f32 0.0, %v415
      %v417 = vpop.f32.mrf.mxu0
      %v418 = vpop.f32.mrf.mxu0
      %v419 = vadd.f32 0.0, %v418
      %v420 = vpop.f32.mrf.mxu0
      %421 = vmatprep.mubr.bf16.mxu0 0
      %422 = vmatmul.mubr.bf16.gmra.mxu0 %v303
      %v423 = vpop.f32.mrf.mxu0
      %v424 = vadd.f32 0.0, %v423
      %v425 = vpop.f32.mrf.mxu0
      %v426 = vpop.f32.mrf.mxu0
      %v427 = vadd.f32 0.0, %v426
      %v428 = vpop.f32.mrf.mxu0
      %429 = vmatprep.mubr.bf16.mxu0 0
      %430 = vmatmul.mubr.bf16.gmra.mxu0 %v306
      %v431 = vpop.f32.mrf.mxu0
      %v432 = vadd.f32 0.0, %v431
      %v433 = vpop.f32.mrf.mxu0
      %v434 = vpop.f32.mrf.mxu0
      %v435 = vadd.f32 0.0, %v434
      %v436 = vpop.f32.mrf.mxu0
      %437 = vmatprep.mubr.bf16.mxu0 0
      %438 = vmatmul.mubr.bf16.gmra.mxu0 %v309
      %v439 = vpop.f32.mrf.mxu0
      %v440 = vadd.f32 0.0, %v439
      %v441 = vpop.f32.mrf.mxu0
      %v442 = vpop.f32.mrf.mxu0
      %v443 = vadd.f32 0.0, %v442
      %v444 = vpop.f32.mrf.mxu0
      %445 = vmatprep.mubr.bf16.mxu0 0
      %446 = vmatmul.mubr.bf16.gmra.mxu0 %v312
      %v447 = vpop.f32.mrf.mxu0
      %v448 = vadd.f32 0.0, %v447
      %v449 = vpop.f32.mrf.mxu0
      %v450 = vpop.f32.mrf.mxu0
      %v451 = vadd.f32 0.0, %v450
      %v452 = vpop.f32.mrf.mxu0
      %453 = vmatprep.mubr.bf16.mxu0 0
      %454 = vmatmul.mubr.bf16.gmra.mxu0 %v315
      %v455 = vpop.f32.mrf.mxu0
      %v456 = vadd.f32 0.0, %v455
      %v457 = vpop.f32.mrf.mxu0
      %v458 = vpop.f32.mrf.mxu0
      %v459 = vadd.f32 0.0, %v458
      %v460 = vpop.f32.mrf.mxu0
      %461 = vmatprep.mubr.bf16.mxu0 0
      %462 = vmatmul.mubr.bf16.gmra.mxu0 %v318
      %v463 = vpop.f32.mrf.mxu0
      %v464 = vadd.f32 0.0, %v463
      %v465 = vpop.f32.mrf.mxu0
      %v466 = vpop.f32.mrf.mxu0
      %v467 = vadd.f32 0.0, %v466
      %v468 = vpop.f32.mrf.mxu0
      %469 = vmatprep.mubr.bf16.mxu0 0
      %470 = vmatmul.mubr.bf16.gmra.mxu0 %v321
      %v471 = vpop.f32.mrf.mxu0
      %v472 = vadd.f32 0.0, %v471
      %v473 = vpop.f32.mrf.mxu0
      %v474 = vpop.f32.mrf.mxu0
      %v475 = vadd.f32 0.0, %v474
      %v476 = vpop.f32.mrf.mxu0
      %477 = vmatprep.mubr.bf16.mxu0 0
      %478 = vmatmul.mubr.bf16.gmra.mxu0 %v324
      %v479 = vpop.f32.mrf.mxu0
      %v480 = vadd.f32 0.0, %v479
      %v481 = vpop.f32.mrf.mxu0
      %v482 = vpop.f32.mrf.mxu0
      %v483 = vadd.f32 0.0, %v482
      %v484 = vpop.f32.mrf.mxu0
      %485 = vmatprep.mubr.bf16.mxu0 0
      %486 = vmatmul.mubr.bf16.gmra.mxu0 %v327
      %v487 = vpop.f32.mrf.mxu0
      %v488 = vadd.f32 0.0, %v487
      %v489 = vpop.f32.mrf.mxu0
      %v490 = vpop.f32.mrf.mxu0
      %v491 = vadd.f32 0.0, %v490
      %v492 = vpop.f32.mrf.mxu0
      %493 = vdwg.mxu0
      %494 = vst [vmem:[%s145] sm:$0xff] %v368
      %495 = vst [vmem:[%s145 + $0x8] sm:$0xff] %v371
      %496 = vst [vmem:[%s145 + $0x10] sm:$0xff] %v376
      %497 = vst [vmem:[%s145 + $0x18] sm:$0xff] %v379
      %498 = vst [vmem:[%s145 + $0x20] sm:$0xff] %v384
      %499 = vst [vmem:[%s145 + $0x28] sm:$0xff] %v387
      %500 = vst [vmem:[%s145 + $0x30] sm:$0xff] %v392
      %501 = vst [vmem:[%s145 + $0x38] sm:$0xff] %v395
      %502 = vst [vmem:[%s145 + $0x40] sm:$0xff] %v400
      %503 = vst [vmem:[%s145 + $0x48] sm:$0xff] %v403
      %504 = vst [vmem:[%s145 + $0x50] sm:$0xff] %v408
      %505 = vst [vmem:[%s145 + $0x58] sm:$0xff] %v411
      %506 = vst [vmem:[%s145 + $0x60] sm:$0xff] %v416
      %507 = vst [vmem:[%s145 + $0x68] sm:$0xff] %v419
      %508 = vst [vmem:[%s145 + $0x70] sm:$0xff] %v424
      %509 = vst [vmem:[%s145 + $0x78] sm:$0xff] %v427
      %510 = vst [vmem:[%s145 + $0x80] sm:$0xff] %v432
      %511 = vst [vmem:[%s145 + $0x88] sm:$0xff] %v435
      %512 = vst [vmem:[%s145 + $0x90] sm:$0xff] %v440
      %513 = vst [vmem:[%s145 + $0x98] sm:$0xff] %v443
      %514 = vst [vmem:[%s145 + $0xa0] sm:$0xff] %v448
      %515 = vst [vmem:[%s145 + $0xa8] sm:$0xff] %v451
      %516 = vst [vmem:[%s145 + $0xb0] sm:$0xff] %v456
      %517 = vst [vmem:[%s145 + $0xb8] sm:$0xff] %v459
      %518 = vst [vmem:[%s145 + $0xc0] sm:$0xff] %v464
      %519 = vst [vmem:[%s145 + $0xc8] sm:$0xff] %v467
      %520 = vst [vmem:[%s145 + $0xd0] sm:$0xff] %v472
      %521 = vst [vmem:[%s145 + $0xd8] sm:$0xff] %v475
      %522 = vst [vmem:[%s145 + $0xe0] sm:$0xff] %v480
      %523 = vst [vmem:[%s145 + $0xe8] sm:$0xff] %v483
      %524 = vst [vmem:[%s145 + $0xf0] sm:$0xff] %v488
      %525 = vst [vmem:[%s145 + $0xf8] sm:$0xff] %v491
      %s526 = smul.u32 32, %s13
      %p527 = scmp.lt.s32.totalorder %s526, 63
      %s528 = scalar_select %p527, %s526, 63
      %s529 = smul.addr %s528, 8
      %s530 = scalar_lea.vmem %s2, %s529
      // Predicated region
      $region29: #{aa_kernel_forward.5} parent=27 // pred_check
        %p531 = pneg %p78
      $region30: #{aa_kernel_forward.5} parent=27 // pred_check_branch
        %533 = sbr.rel (%p531) target = $region32
      $region31: #{aa_kernel_forward.5} parent=27 // pred_region
        %s534 = smul.u32 32, %s13
      $region32: #{aa_kernel_forward.5} parent=27 // pred_fallthru
        _
    $region28: #{aa_kernel_forward.5} parent=5 // pred_fallthru
      _
    %p535 = scmp.le.s32.totalorder 2, %s8
    // Predicated region
    $region33: #{aa_kernel_forward.5} parent=5 // pred_check
      %p536 = pneg %p535
    $region34: #{aa_kernel_forward.5} parent=5 // pred_check_branch
      %538 = sbr.rel (%p536) target = $region36
    $region35: #{aa_kernel_forward.5} parent=5 // pred_region
      %s539 = ssub.s32 %s8, 2
      // Predicated region
      $region37: #{aa_kernel_forward.5} parent=35 // pred_check
        %p540 = pneg %p84
      $region38: #{aa_kernel_forward.5} parent=35 // pred_check_branch
        %542 = sbr.rel (%p540) target = $region40
      $region39: #{aa_kernel_forward.5} parent=35 // pred_region
        %s543 = smul.u32 32, %s14
        %p544 = scmp.lt.s32.totalorder %s543, 63
        %s545 = scalar_select %p544, %s543, 63
        %s546 = smul.addr %s545, 8
        %s547 = scalar_lea.vmem %s2, %s546
      $region40: #{aa_kernel_forward.5} parent=35 // pred_fallthru
        _
    $region36: #{aa_kernel_forward.5} parent=5 // pred_fallthru
      _
  $region6: #{aa_kernel_forward.5} parent=0 // loop_footer
    %s12 = sadd.s32 1, %s8
  $region7: #{aa_kernel_forward.5} parent=0 // loop_footer_branch
    %7 = sbr.rel target = $region3
  $region8: #{aa_kernel_forward.5} parent=0 // loop_exit
    _

// kernel: aa_kernel_forward.7
$region0: #{aa_kernel_forward.7}
  #allocation0 [shape = 'u32[]', space=smem, size = 0x4, offset = 0x4, fixed_abs, tag = 'smem constant byte address 0x4 - core index']
  #allocation1 [shape = 'u32[144,128]{1,0:T(1,128)}', space=vmem, size = 0x12000, scoped, tag = 'internal scratch']
  #allocation2 [shape = 'f32[1]{0:T(128)S(6)}', space=smem, size = 0x200, scoped, tag = 'scoped memory for aa_kernel_forward.7']
  %s0 = inlined_call_operand.<no memory space> [shape: f32[1], index: 0, kind: input, shape index: {}]
  %s1 = inlined_call_operand.vmem [shape: f32[2,64,16], index: 1, kind: input, shape index: {}]
  %s2 = inlined_call_operand.vmem [shape: f32[2,64,16], index: 2, kind: input, shape index: {}]
  %s3 = inlined_call_operand.vmem [shape: bf16[2,16,512], index: 3, kind: input, shape index: {}]
  %s4 = inlined_call_operand.vmem [shape: f32[2,16,512], index: 4, kind: input, shape index: {}]
  %s5 = inlined_call_operand.vmem [shape: f32[2,16,512], index: 5, kind: output, shape index: {}]
  %s6 = sld [smem:[#allocation0]]
  $region53: #{aa_kernel_forward.7} parent=0
    _
  %s8 = ssub.s32 1, %s6
  %s9 = scalar_select 0, %s8, %s6
  %10 = sst [smem:[#allocation2]] %s0
  loop: start=0, step=1, limit=4
  $region2: #{aa_kernel_forward.7} parent=0 // loop_pre_header
    _
  $region3: #{aa_kernel_forward.7} parent=0 // loop_header
    %s12 = sphi 0, %s16
    %p13 = scmp.ge.s32.totalorder %s12, 4
    %s20 = sphi 0, %s20
    %s22 = sphi 0, %s20
    %s23 = sphi 0, %s22
    %s37 = sphi 0, %s23
    %s43 = sphi 0, %s45
    %s46 = sphi 0, %s43
    %s47 = sphi 0, %s46
    %s63 = sphi 0, %s47
    %s69 = sphi 0, %s71
    %s72 = sphi 0, %s69
    %s73 = sphi 0, %s72
    %s89 = sphi 0, %s73
    %s95 = sphi 0, %s97
    %s98 = sphi 0, %s95
    %s99 = sphi 0, %s98
    %s115 = sphi 0, %s99
    %s121 = sphi 0, %s123
    %s124 = sphi 0, %s121
    %s125 = sphi 0, %s124
    %s141 = sphi 0, %s125
    %s147 = sphi 0, %s149
    %s150 = sphi 0, %s147
    %s151 = sphi 0, %s150
    %s167 = sphi 0, %s151
  $region4: #{aa_kernel_forward.7} parent=0 // loop_header_branch
    %15 = sbr.rel (%p13) target = $region8
  $region5: #{aa_kernel_forward.7} parent=0 // loop_body
    %s17 = ssub.s32 %s12, 1
    %s18 = ssub.s32 %s12, 2
    %s19 = sadd.s32 %s12, 1
    %s21 = sadd.s32 %s20, 1
    %p24 = scmp.eq.s32.totalorder %s12, 1
    %p25 = scmp.ne.s32.totalorder %s20, %s22
    %p26 = scmp.eq.s32.totalorder %s12, 0
    %p27 = por %p25, %p26
    %p28 = scmp.ne.s32.totalorder %s20, %s22
    %p29 = scmp.eq.s32.totalorder %s17, 1
    %p30 = por %p28, %p29
    %p31 = scmp.ne.s32.totalorder %s22, %s23
    %p32 = scmp.eq.s32.totalorder %s17, 0
    %p33 = por %p31, %p32
    %p34 = scmp.ne.s32.totalorder %s22, %s23
    %p35 = scmp.eq.s32.totalorder %s18, 1
    %p36 = por %p34, %p35
    %p38 = scmp.ne.s32.totalorder %s23, %s37
    %p39 = scmp.eq.s32.totalorder %s18, 0
    %p40 = por %p38, %p39
    %s41 = ssub.s32 %s12, %s19
    %p42 = scmp.eq.s32.totalorder %s41, 0
    %s44 = sadd.s32 %s43, 1
    %s45 = scalar_select %p42, %s43, %s44
    %p48 = pneg %p42
    %p49 = scmp.eq.s32.totalorder %s12, 1
    %p50 = por %p48, %p49
    %p51 = scmp.ne.s32.totalorder %s43, %s46
    %p52 = scmp.eq.s32.totalorder %s12, 0
    %p53 = por %p51, %p52
    %p54 = scmp.ne.s32.totalorder %s43, %s46
    %p55 = scmp.eq.s32.totalorder %s17, 1
    %p56 = por %p54, %p55
    %p57 = scmp.ne.s32.totalorder %s46, %s47
    %p58 = scmp.eq.s32.totalorder %s17, 0
    %p59 = por %p57, %p58
    %p60 = scmp.ne.s32.totalorder %s46, %s47
    %p61 = scmp.eq.s32.totalorder %s18, 1
    %p62 = por %p60, %p61
    %p64 = scmp.ne.s32.totalorder %s47, %s63
    %p65 = scmp.eq.s32.totalorder %s18, 0
    %p66 = por %p64, %p65
    %s67 = ssub.s32 %s12, %s19
    %p68 = scmp.eq.s32.totalorder %s67, 0
    %s70 = sadd.s32 %s69, 1
    %s71 = scalar_select %p68, %s69, %s70
    %p74 = pneg %p68
    %p75 = scmp.eq.s32.totalorder %s12, 1
    %p76 = por %p74, %p75
    %p77 = scmp.ne.s32.totalorder %s69, %s72
    %p78 = scmp.eq.s32.totalorder %s12, 0
    %p79 = por %p77, %p78
    %p80 = scmp.ne.s32.totalorder %s69, %s72
    %p81 = scmp.eq.s32.totalorder %s17, 1
    %p82 = por %p80, %p81
    %p83 = scmp.ne.s32.totalorder %s72, %s73
    %p84 = scmp.eq.s32.totalorder %s17, 0
    %p85 = por %p83, %p84
    %p86 = scmp.ne.s32.totalorder %s72, %s73
    %p87 = scmp.eq.s32.totalorder %s18, 1
    %p88 = por %p86, %p87
    %p90 = scmp.ne.s32.totalorder %s73, %s89
    %p91 = scmp.eq.s32.totalorder %s18, 0
    %p92 = por %p90, %p91
    %s93 = ssub.s32 %s12, %s19
    %p94 = scmp.eq.s32.totalorder %s93, 0
    %s96 = sadd.s32 %s95, 1
    %s97 = scalar_select %p94, %s95, %s96
    %p100 = pneg %p94
    %p101 = scmp.eq.s32.totalorder %s12, 1
    %p102 = por %p100, %p101
    %p103 = scmp.ne.s32.totalorder %s95, %s98
    %p104 = scmp.eq.s32.totalorder %s12, 0
    %p105 = por %p103, %p104
    %p106 = scmp.ne.s32.totalorder %s95, %s98
    %p107 = scmp.eq.s32.totalorder %s17, 1
    %p108 = por %p106, %p107
    %p109 = scmp.ne.s32.totalorder %s98, %s99
    %p110 = scmp.eq.s32.totalorder %s17, 0
    %p111 = por %p109, %p110
    %p112 = scmp.ne.s32.totalorder %s98, %s99
    %p113 = scmp.eq.s32.totalorder %s18, 1
    %p114 = por %p112, %p113
    %p116 = scmp.ne.s32.totalorder %s99, %s115
    %p117 = scmp.eq.s32.totalorder %s18, 0
    %p118 = por %p116, %p117
    %s119 = ssub.s32 %s12, %s19
    %p120 = scmp.eq.s32.totalorder %s119, 0
    %s122 = sadd.s32 %s121, 1
    %s123 = scalar_select %p120, %s121, %s122
    %p126 = pneg %p120
    %p127 = scmp.eq.s32.totalorder %s12, 1
    %p128 = por %p126, %p127
    %p129 = scmp.ne.s32.totalorder %s121, %s124
    %p130 = scmp.eq.s32.totalorder %s12, 0
    %p131 = por %p129, %p130
    %p132 = scmp.ne.s32.totalorder %s121, %s124
    %p133 = scmp.eq.s32.totalorder %s17, 1
    %p134 = por %p132, %p133
    %p135 = scmp.ne.s32.totalorder %s124, %s125
    %p136 = scmp.eq.s32.totalorder %s17, 0
    %p137 = por %p135, %p136
    %p138 = scmp.ne.s32.totalorder %s124, %s125
    %p139 = scmp.eq.s32.totalorder %s18, 1
    %p140 = por %p138, %p139
    %p142 = scmp.ne.s32.totalorder %s125, %s141
    %p143 = scmp.eq.s32.totalorder %s18, 0
    %p144 = por %p142, %p143
    %s145 = ssub.s32 %s12, %s19
    %p146 = scmp.eq.s32.totalorder %s145, 0
    %s148 = sadd.s32 %s147, 1
    %s149 = scalar_select %p146, %s147, %s148
    %p152 = pneg %p146
    %p153 = scmp.eq.s32.totalorder %s12, 1
    %p154 = por %p152, %p153
    %p155 = scmp.ne.s32.totalorder %s147, %s150
    %p156 = scmp.eq.s32.totalorder %s12, 0
    %p157 = por %p155, %p156
    %p158 = scmp.ne.s32.totalorder %s147, %s150
    %p159 = scmp.eq.s32.totalorder %s17, 1
    %p160 = por %p158, %p159
    %p161 = scmp.ne.s32.totalorder %s150, %s151
    %p162 = scmp.eq.s32.totalorder %s17, 0
    %p163 = por %p161, %p162
    %p164 = scmp.ne.s32.totalorder %s150, %s151
    %p165 = scmp.eq.s32.totalorder %s18, 1
    %p166 = por %p164, %p165
    %p168 = scmp.ne.s32.totalorder %s151, %s167
    %p169 = scmp.eq.s32.totalorder %s18, 0
    %p170 = por %p168, %p169
    %p171 = scmp.le.s32.totalorder 1, %s12
    %p172 = scmp.lt.s32.totalorder %s12, 3
    %p173 = pnand %p171, %p172
    %p174 = pneg %p173
    // Predicated region
    $region9: #{aa_kernel_forward.7} parent=5 // pred_check
      _
    $region10: #{aa_kernel_forward.7} parent=5 // pred_check_branch
      %176 = sbr.rel (%p173) target = $region12
    $region11: #{aa_kernel_forward.7} parent=5 // pred_region
      %s177 = ssub.s32 %s12, 1
      // Predicated region
      $region13: #{aa_kernel_forward.7} parent=11 // pred_check
        %p178 = pneg %p33
      $region14: #{aa_kernel_forward.7} parent=11 // pred_check_branch
        %180 = sbr.rel (%p178) target = $region16
      $region15: #{aa_kernel_forward.7} parent=11 // pred_region
        _
      $region16: #{aa_kernel_forward.7} parent=11 // pred_fallthru
        _
    $region12: #{aa_kernel_forward.7} parent=5 // pred_fallthru
      _
    %p181 = scmp.lt.s32.totalorder %s12, 2
    // Predicated region
    $region17: #{aa_kernel_forward.7} parent=5 // pred_check
      %p182 = pneg %p181
    $region18: #{aa_kernel_forward.7} parent=5 // pred_check_branch
      %184 = sbr.rel (%p182) target = $region20
    $region19: #{aa_kernel_forward.7} parent=5 // pred_region
      // Predicated region
      $region21: #{aa_kernel_forward.7} parent=19 // pred_check
        %p185 = pneg %p53
      $region22: #{aa_kernel_forward.7} parent=19 // pred_check_branch
        %187 = sbr.rel (%p185) target = $region24
      $region23: #{aa_kernel_forward.7} parent=19 // pred_region
        %p188 = scmp.lt.s32.totalorder %s12, 1
        %s189 = scalar_select %p188, %s12, 1
        %s190 = smul.addr %s189, 8
        %s191 = smul.addr %s190, 8
        %s192 = scalar_lea.vmem %s1, %s191
      $region24: #{aa_kernel_forward.7} parent=19 // pred_fallthru
        _
      // Predicated region
      $region25: #{aa_kernel_forward.7} parent=19 // pred_check
        %p193 = pneg %p79
      $region26: #{aa_kernel_forward.7} parent=19 // pred_check_branch
        %195 = sbr.rel (%p193) target = $region28
      $region27: #{aa_kernel_forward.7} parent=19 // pred_region
        %p196 = scmp.lt.s32.totalorder %s12, 1
        %s197 = scalar_select %p196, %s12, 1
        %s198 = smul.addr %s197, 8
        %s199 = smul.addr %s198, 8
        %s200 = scalar_lea.vmem %s2, %s199
      $region28: #{aa_kernel_forward.7} parent=19 // pred_fallthru
        _
      // Predicated region
      $region29: #{aa_kernel_forward.7} parent=19 // pred_check
        %p201 = pneg %p105
      $region30: #{aa_kernel_forward.7} parent=19 // pred_check_branch
        %203 = sbr.rel (%p201) target = $region32
      $region31: #{aa_kernel_forward.7} parent=19 // pred_region
        %p204 = scmp.lt.s32.totalorder %s12, 1
        %s205 = scalar_select %p204, %s12, 1
        %s206 = smul.addr %s205, 8
        %s207 = smul.addr %s206, 4
        %s208 = scalar_lea.vmem %s3, %s207
      $region32: #{aa_kernel_forward.7} parent=19 // pred_fallthru
        _
      // Predicated region
      $region33: #{aa_kernel_forward.7} parent=19 // pred_check
        %p209 = pneg %p131
      $region34: #{aa_kernel_forward.7} parent=19 // pred_check_branch
        %211 = sbr.rel (%p209) target = $region36
      $region35: #{aa_kernel_forward.7} parent=19 // pred_region
        %p212 = scmp.lt.s32.totalorder %s12, 1
        %s213 = scalar_select %p212, %s12, 1
        %s214 = smul.addr %s213, 8
        %s215 = smul.addr %s214, 8
        %s216 = scalar_lea.vmem %s4, %s215
      $region36: #{aa_kernel_forward.7} parent=19 // pred_fallthru
        _
    $region20: #{aa_kernel_forward.7} parent=5 // pred_fallthru
      _
    %p217 = scmp.le.s32.totalorder 1, %s12
    %p218 = scmp.lt.s32.totalorder %s12, 3
    %p219 = pnand %p217, %p218
    %p220 = pneg %p219
    // Predicated region
    $region37: #{aa_kernel_forward.7} parent=5 // pred_check
      _
    $region38: #{aa_kernel_forward.7} parent=5 // pred_check_branch
      %222 = sbr.rel (%p219) target = $region40
    $region39: #{aa_kernel_forward.7} parent=5 // pred_region
      %s223 = ssub.s32 %s12, 1
      %p224 = pneg %p33
      %p225 = pneg %p30
      %p226 = scmp.lt.s32.totalorder %s17, 1
      %s227 = scalar_select %p226, %s17, 1
      %s228 = smul.addr %s227, 8
      %s229 = smul.addr %s228, 8
      %s230 = scalar_lea.vmem %s1, %s229
      %p231 = pneg %p59
      %p232 = pneg %p56
      %p233 = scmp.lt.s32.totalorder %s17, 1
      %s234 = scalar_select %p233, %s17, 1
      %s235 = smul.addr %s234, 8
      %s236 = smul.addr %s235, 8
      %s237 = scalar_lea.vmem %s2, %s236
      %p238 = pneg %p85
      %p239 = pneg %p82
      %p240 = scmp.lt.s32.totalorder %s17, 1
      %s241 = scalar_select %p240, %s17, 1
      %s242 = smul.addr %s241, 8
      %s243 = smul.addr %s242, 4
      %s244 = scalar_lea.vmem %s3, %s243
      %p245 = pneg %p111
      %p246 = pneg %p108
      %p247 = scmp.lt.s32.totalorder %s17, 1
      %s248 = scalar_select %p247, %s17, 1
      %s249 = smul.addr %s248, 8
      %s250 = smul.addr %s249, 8
      %s251 = scalar_lea.vmem %s4, %s250
      %p252 = pneg %p137
      %p253 = pneg %p134
      %p254 = pneg %p163
      %p255 = pneg %p160
      %p256 = scmp.lt.s32.totalorder %s17, 1
      %s257 = scalar_select %p256, %s17, 1
      %s258 = smul.addr %s257, 8
      %s259 = smul.addr %s258, 8
      %s260 = scalar_lea.vmem %s5, %s259
      %p261 = scmp.lt.s32.totalorder %s17, 1
      %s262 = scalar_select %p261, %s17, 1
      %s263 = smul.addr %s262, 8
      %s264 = smul.addr %s263, 8
      %s265 = scalar_lea.vmem %s1, %s264
      %p266 = scmp.lt.s32.totalorder %s17, 1
      %s267 = scalar_select %p266, %s17, 1
      %s268 = smul.addr %s267, 8
      %s269 = smul.addr %s268, 8
      %s270 = scalar_lea.vmem %s2, %s269
      %p271 = scmp.lt.s32.totalorder %s17, 1
      %s272 = scalar_select %p271, %s17, 1
      %s273 = smul.addr %s272, 8
      %s274 = smul.addr %s273, 4
      %s275 = scalar_lea.vmem %s3, %s274
      %p276 = scmp.lt.s32.totalorder %s17, 1
      %s277 = scalar_select %p276, %s17, 1
      %s278 = smul.addr %s277, 8
      %s279 = smul.addr %s278, 8
      %s280 = scalar_lea.vmem %s4, %s279
      %p281 = scmp.lt.s32.totalorder %s17, 1
      %s282 = scalar_select %p281, %s17, 1
      %s283 = smul.addr %s282, 8
      %s284 = smul.addr %s283, 8
      %s285 = scalar_lea.vmem %s5, %s284
      %v287 = vld [vmem:[%s265] sm:$0xff]
      %v288 = vld [vmem:[%s265 + $0x8] sm:$0xff]
      %v289 = vld [vmem:[%s265 + $0x10] sm:$0xff]
      %v290 = vld [vmem:[%s265 + $0x18] sm:$0xff]
      %v291 = vld [vmem:[%s265 + $0x20] sm:$0xff]
      %v292 = vld [vmem:[%s265 + $0x28] sm:$0xff]
      %v293 = vld [vmem:[%s265 + $0x30] sm:$0xff]
      %v294 = vld [vmem:[%s265 + $0x38] sm:$0xff]
      %v295 = vld [vmem:[%s270] sm:$0xff]
      %v296 = vld [vmem:[%s270 + $0x8] sm:$0xff]
      %v297 = vld [vmem:[%s270 + $0x10] sm:$0xff]
      %v298 = vld [vmem:[%s270 + $0x18] sm:$0xff]
      %v299 = vld [vmem:[%s270 + $0x20] sm:$0xff]
      %v300 = vld [vmem:[%s270 + $0x28] sm:$0xff]
      %v301 = vld [vmem:[%s270 + $0x30] sm:$0xff]
      %v302 = vld [vmem:[%s270 + $0x38] sm:$0xff]
      %303 = vxpose.xlu0.b32.start [1/16] %v287, 128
      %304 = vxpose.xlu0.b32.cont [2/16] %v288, 128
      %305 = vxpose.xlu0.b32.cont [3/16] %v289, 128
      %306 = vxpose.xlu0.b32.cont [4/16] %v290, 128
      %307 = vxpose.xlu0.b32.cont [5/16] %v291, 128
      %308 = vxpose.xlu0.b32.cont [6/16] %v292, 128
      %309 = vxpose.xlu0.b32.cont [7/16] %v293, 128
      %310 = vxpose.xlu0.b32.cont [8/16] %v294, 128
      %311 = vxpose.xlu0.b32.cont [9/16] 0.0, 128
      %312 = vxpose.xlu0.b32.cont [10/16] 0.0, 128
      %313 = vxpose.xlu0.b32.cont [11/16] 0.0, 128
      %314 = vxpose.xlu0.b32.cont [12/16] 0.0, 128
      %315 = vxpose.xlu0.b32.cont [13/16] 0.0, 128
      %316 = vxpose.xlu0.b32.cont [14/16] 0.0, 128
      %317 = vxpose.xlu0.b32.cont [15/16] 0.0, 128
      %318 = vxpose.xlu0.b32.end [16/16] 0.0, 128
      %v319 = vpop.trf.xlu0
      %v320 = vpop.trf.xlu0
      %v321 = vpop.trf.xlu0
      %v322 = vpop.trf.xlu0
      %v323 = vpop.trf.xlu0
      %v324 = vpop.trf.xlu0
      %v325 = vpop.trf.xlu0
      %v326 = vpop.trf.xlu0
      %v327 = vpop.trf.xlu0
      %v328 = vpop.trf.xlu0
      %v329 = vpop.trf.xlu0
      %v330 = vpop.trf.xlu0
      %v331 = vpop.trf.xlu0
      %v332 = vpop.trf.xlu0
      %v333 = vpop.trf.xlu0
      %v334 = vpop.trf.xlu0
      %vm335 = vcmask 523264
      %v337 = vsel %vm335, %v319, 0
      %v340 = vsel %vm335, %v320, 0
      %342 = vmatprep.subr.mxu0 0.0
      %343 = vmatpush1.msra.mxu0 0.0
      %344 = vmatprep.subr.mxu0 0.0
      %345 = vmatpush1.msra.mxu0 0.0
      %346 = vmatprep.subr.mxu0 0.0
      %347 = vmatpush1.msra.mxu0 0.0
      %348 = vmatprep.subr.mxu0 0.0
      %349 = vmatpush1.msra.mxu0 0.0
      %350 = vmatprep.subr.mxu0 0.0
      %351 = vmatpush1.msra.mxu0 0.0
      %352 = vmatprep.subr.mxu0 0.0
      %353 = vmatpush1.msra.mxu0 0.0
      %354 = vmatprep.subr.mxu0 0.0
      %355 = vmatpush1.msra.mxu0 0.0
      %356 = vmatprep.subr.mxu0 0.0
      %357 = vmatpush1.msra.mxu0 0.0
      %358 = vmatprep.subr.mxu0 0.0
      %359 = vmatpush1.msra.mxu0 %v302
      %360 = vmatprep.subr.mxu0 0.0
      %361 = vmatpush1.msra.mxu0 %v301
      %362 = vmatprep.subr.mxu0 0.0
      %363 = vmatpush1.msra.mxu0 %v300
      %364 = vmatprep.subr.mxu0 0.0
      %365 = vmatpush1.msra.mxu0 %v299
      %366 = vmatprep.subr.mxu0 0.0
      %367 = vmatpush1.msra.mxu0 %v298
      %368 = vmatprep.subr.mxu0 0.0
      %369 = vmatpush1.msra.mxu0 %v297
      %370 = vmatprep.subr.mxu0 0.0
      %371 = vmatpush1.msra.mxu0 %v296
      %372 = vmatprep.subr.mxu0 0.0
      %373 = vmatpush1.msra.mxu0 %v295
      %374 = vmatprep.subr.mxu0 0.0
      %375 = vmatpush2.msra.mxu0 0.0
      %376 = vmatprep.subr.mxu0 0.0
      %377 = vmatpush2.msra.mxu0 0.0
      %378 = vmatprep.subr.mxu0 0.0
      %379 = vmatpush2.msra.mxu0 0.0
      %380 = vmatprep.subr.mxu0 0.0
      %381 = vmatpush2.msra.mxu0 0.0
      %382 = vmatprep.subr.mxu0 0.0
      %383 = vmatpush2.msra.mxu0 0.0
      %384 = vmatprep.subr.mxu0 0.0
      %385 = vmatpush2.msra.mxu0 0.0
      %386 = vmatprep.subr.mxu0 0.0
      %387 = vmatpush2.msra.mxu0 0.0
      %388 = vmatprep.subr.mxu0 0.0
      %389 = vmatpush2.msra.mxu0 0.0
      %390 = vmatprep.subr.mxu0 0.0
      %391 = vmatpush2.msra.mxu0 0.0
      %392 = vmatprep.subr.mxu0 0.0
      %393 = vmatpush2.msra.mxu0 0.0
      %394 = vmatprep.subr.mxu0 0.0
      %395 = vmatpush2.msra.mxu0 0.0
      %396 = vmatprep.subr.mxu0 0.0
      %397 = vmatpush2.msra.mxu0 0.0
      %398 = vmatprep.subr.mxu0 0.0
      %399 = vmatpush2.msra.mxu0 0.0
      %400 = vmatprep.subr.mxu0 0.0
      %401 = vmatpush2.msra.mxu0 0.0
      %402 = vmatprep.subr.mxu0 0.0
      %403 = vmatpush2.msra.mxu0 0.0
      %404 = vmatprep.subr.mxu0 0.0
      %405 = vmatpush2.msra.mxu0 0.0
      %406 = vmatprep.mubr.f32.mxu0 0.0
      %407 = vmatmul.mubr.f32.gmra.mxu0 %v337
      %v408 = vpop.f32.mrf.mxu0
      %v409 = vadd.f32 0.0, %v408
      %v410 = vpop.f32.mrf.mxu0
      %411 = vmatprep.mubr.f32.mxu0 0.0
      %412 = vmatmul.mubr.f32.gmra.mxu0 %v340
      %v413 = vpop.f32.mrf.mxu0
      %v414 = vadd.f32 0.0, %v413
      %v415 = vpop.f32.mrf.mxu0
      %416 = vdwg.mxu0
      %vm417 = vcmask 130048
      %v418 = vsel %vm417, %v409, -inf
      %419 = vmax.xlane.f32.xlu0 %v418
      %v420 = vpop.xlane.xlu0 %419
      %v421 = vsel %vm417, %v414, -inf
      %422 = vmax.xlane.f32.xlu0 %v421
      %v423 = vpop.xlane.xlu0 %422
      %v424 = vsub.f32 %v409, %v420
      %v425 = vsub.f32 %v414, %v423
      %v426 = vmul.f32 %v424, 1.442695
      %v427 = vpow.pop %v426
      %v428 = vmul.f32 %v425, 1.442695
      %v429 = vpow.pop %v428
      %v430 = vsel %vm417, %v427, 0.0
      %431 = vadd.xlane.f32.xlu0 %v430
      %v432 = vpop.xlane.xlu0 %431
      %v433 = vsel %vm417, %v429, 0.0
      %434 = vadd.xlane.f32.xlu0 %v433
      %v435 = vpop.xlane.xlu0 %434
      %v436 = vrcp.pop %v432
      %v437 = vrcp.pop %v435
      %v438 = vmul.f32 %v427, %v436
      %v439 = vmul.f32 %v429, %v437
      %v440 = vpack.c.bf16 %v439, %v438
      %v441 = vld [vmem:[%s275] sm:$0xff]
      %v442 = vld [vmem:[%s275 + $0x8] sm:$0xff]
      %v443 = vld [vmem:[%s275 + $0x10] sm:$0xff]
      %v444 = vld [vmem:[%s275 + $0x18] sm:$0xff]
      %v449 = vunpack.c.l.b16 %v441
      %v450 = vunpack.c.h.b16 %v441
      %v451 = vunpack.c.l.b16 %v442
      %v452 = vunpack.c.h.b16 %v442
      %v453 = vunpack.c.l.b16 %v443
      %v454 = vunpack.c.h.b16 %v443
      %v455 = vunpack.c.l.b16 %v444
      %v456 = vunpack.c.h.b16 %v444
      %v457 = vpack.c.b16 %v453, %v449
      %v458 = vpack.c.b16 %v454, %v450
      %v459 = vpack.c.b16 %v455, %v451
      %v460 = vpack.c.b16 %v456, %v452
      %v466 = vsel %vm417, %v440, 0
      %468 = vmatprep.subr.bf16.mxu0 0
      %469 = vmatpush1.bf16.msra.mxu0 0
      %470 = vmatprep.subr.bf16.mxu0 0
      %471 = vmatpush1.bf16.msra.mxu0 0
      %472 = vmatprep.subr.bf16.mxu0 0
      %473 = vmatpush1.bf16.msra.mxu0 0
      %474 = vmatprep.subr.bf16.mxu0 0
      %475 = vmatpush1.bf16.msra.mxu0 0
      %476 = vmatprep.subr.bf16.mxu0 0
      %477 = vmatpush1.bf16.msra.mxu0 0
      %478 = vmatprep.subr.bf16.mxu0 0
      %479 = vmatpush1.bf16.msra.mxu0 0
      %480 = vmatprep.subr.bf16.mxu0 0
      %481 = vmatpush1.bf16.msra.mxu0 0
      %482 = vmatprep.subr.bf16.mxu0 %v458
      %483 = vmatpush1.bf16.msra.mxu0 %v457
      %484 = vmatprep.subr.bf16.mxu0 0
      %485 = vmatpush2.bf16.msra.mxu0 0
      %486 = vmatprep.subr.bf16.mxu0 0
      %487 = vmatpush2.bf16.msra.mxu0 0
      %488 = vmatprep.subr.bf16.mxu0 0
      %489 = vmatpush2.bf16.msra.mxu0 0
      %490 = vmatprep.subr.bf16.mxu0 0
      %491 = vmatpush2.bf16.msra.mxu0 0
      %492 = vmatprep.subr.bf16.mxu0 0
      %493 = vmatpush2.bf16.msra.mxu0 0
      %494 = vmatprep.subr.bf16.mxu0 0
      %495 = vmatpush2.bf16.msra.mxu0 0
      %496 = vmatprep.subr.bf16.mxu0 0
      %497 = vmatpush2.bf16.msra.mxu0 0
      %498 = vmatprep.subr.bf16.mxu0 0
      %499 = vmatpush2.bf16.msra.mxu0 0
      %500 = vmatprep.mubr.bf16.mxu0 0
      %501 = vmatmul.mubr.bf16.gmra.mxu0 %v466
      %v502 = vpop.f32.mrf.mxu0
      %v503 = vadd.f32 0.0, %v502
      %v504 = vpop.f32.mrf.mxu0
      %v505 = vadd.f32 0.0, %v504
      %v506 = vpop.f32.mrf.mxu0
      %v507 = vadd.f32 0.0, %v506
      %v508 = vpop.f32.mrf.mxu0
      %v509 = vadd.f32 0.0, %v508
      %510 = vdwg.mxu0
      %511 = vmatprep.subr.bf16.mxu0 0
      %512 = vmatpush1.bf16.msra.mxu0 0
      %513 = vmatprep.subr.bf16.mxu0 0
      %514 = vmatpush1.bf16.msra.mxu0 0
      %515 = vmatprep.subr.bf16.mxu0 0
      %516 = vmatpush1.bf16.msra.mxu0 0
      %517 = vmatprep.subr.bf16.mxu0 0
      %518 = vmatpush1.bf16.msra.mxu0 0
      %519 = vmatprep.subr.bf16.mxu0 0
      %520 = vmatpush1.bf16.msra.mxu0 0
      %521 = vmatprep.subr.bf16.mxu0 0
      %522 = vmatpush1.bf16.msra.mxu0 0
      %523 = vmatprep.subr.bf16.mxu0 0
      %524 = vmatpush1.bf16.msra.mxu0 0
      %525 = vmatprep.subr.bf16.mxu0 %v460
      %526 = vmatpush1.bf16.msra.mxu0 %v459
      %527 = vmatprep.subr.bf16.mxu0 0
      %528 = vmatpush2.bf16.msra.mxu0 0
      %529 = vmatprep.subr.bf16.mxu0 0
      %530 = vmatpush2.bf16.msra.mxu0 0
      %531 = vmatprep.subr.bf16.mxu0 0
      %532 = vmatpush2.bf16.msra.mxu0 0
      %533 = vmatprep.subr.bf16.mxu0 0
      %534 = vmatpush2.bf16.msra.mxu0 0
      %535 = vmatprep.subr.bf16.mxu0 0
      %536 = vmatpush2.bf16.msra.mxu0 0
      %537 = vmatprep.subr.bf16.mxu0 0
      %538 = vmatpush2.bf16.msra.mxu0 0
      %539 = vmatprep.subr.bf16.mxu0 0
      %540 = vmatpush2.bf16.msra.mxu0 0
      %541 = vmatprep.subr.bf16.mxu0 0
      %542 = vmatpush2.bf16.msra.mxu0 0
      %543 = vmatprep.mubr.bf16.mxu0 0
      %544 = vmatmul.mubr.bf16.gmra.mxu0 %v466
      %v545 = vpop.f32.mrf.mxu0
      %v546 = vadd.f32 0.0, %v545
      %v547 = vpop.f32.mrf.mxu0
      %v548 = vadd.f32 0.0, %v547
      %v549 = vpop.f32.mrf.mxu0
      %v550 = vadd.f32 0.0, %v549
      %v551 = vpop.f32.mrf.mxu0
      %v552 = vadd.f32 0.0, %v551
      %553 = vdwg.mxu0
      %s554 = sld [smem:[#allocation2]]
      %v555 = vstv %s554
      %v556 = vmul.f32 %v555, %v503
      %v557 = vmul.f32 %v555, %v505
      %v558 = vmul.f32 %v555, %v546
      %v559 = vmul.f32 %v555, %v548
      %v560 = vmul.f32 %v555, %v507
      %v561 = vmul.f32 %v555, %v509
      %v562 = vmul.f32 %v555, %v550
      %v563 = vmul.f32 %v555, %v552
      %v564 = vld [vmem:[%s280] sm:$0xff]
      %v565 = vld [vmem:[%s280 + $0x8] sm:$0xff]
      %v566 = vld [vmem:[%s280 + $0x10] sm:$0xff]
      %v567 = vld [vmem:[%s280 + $0x18] sm:$0xff]
      %v568 = vld [vmem:[%s280 + $0x20] sm:$0xff]
      %v569 = vld [vmem:[%s280 + $0x28] sm:$0xff]
      %v570 = vld [vmem:[%s280 + $0x30] sm:$0xff]
      %v571 = vld [vmem:[%s280 + $0x38] sm:$0xff]
      %v572 = vadd.f32 %v556, %v564
      %v573 = vadd.f32 %v557, %v565
      %v574 = vadd.f32 %v558, %v566
      %v575 = vadd.f32 %v559, %v567
      %v576 = vadd.f32 %v560, %v568
      %v577 = vadd.f32 %v561, %v569
      %v578 = vadd.f32 %v562, %v570
      %v579 = vadd.f32 %v563, %v571
      %580 = vst [vmem:[%s285] sm:$0xff] %v572
      %581 = vst [vmem:[%s285 + $0x8] sm:$0xff] %v573
      %582 = vst [vmem:[%s285 + $0x10] sm:$0xff] %v574
      %583 = vst [vmem:[%s285 + $0x18] sm:$0xff] %v575
      %584 = vst [vmem:[%s285 + $0x20] sm:$0xff] %v576
      %585 = vst [vmem:[%s285 + $0x28] sm:$0xff] %v577
      %586 = vst [vmem:[%s285 + $0x30] sm:$0xff] %v578
      %587 = vst [vmem:[%s285 + $0x38] sm:$0xff] %v579
      %p588 = scmp.lt.s32.totalorder %s17, 1
      %s589 = scalar_select %p588, %s17, 1
      %s590 = smul.addr %s589, 8
      %s591 = smul.addr %s590, 8
      %s592 = scalar_lea.vmem %s5, %s591
      // Predicated region
      $region41: #{aa_kernel_forward.7} parent=39 // pred_check
        %p593 = pneg %p160
      $region42: #{aa_kernel_forward.7} parent=39 // pred_check_branch
        %595 = sbr.rel (%p593) target = $region44
      $region43: #{aa_kernel_forward.7} parent=39 // pred_region
        _
      $region44: #{aa_kernel_forward.7} parent=39 // pred_fallthru
        _
    $region40: #{aa_kernel_forward.7} parent=5 // pred_fallthru
      _
    %p596 = scmp.le.s32.totalorder 2, %s12
    // Predicated region
    $region45: #{aa_kernel_forward.7} parent=5 // pred_check
      %p597 = pneg %p596
    $region46: #{aa_kernel_forward.7} parent=5 // pred_check_branch
      %599 = sbr.rel (%p597) target = $region48
    $region47: #{aa_kernel_forward.7} parent=5 // pred_region
      %s600 = ssub.s32 %s12, 2
      // Predicated region
      $region49: #{aa_kernel_forward.7} parent=47 // pred_check
        %p601 = pneg %p166
      $region50: #{aa_kernel_forward.7} parent=47 // pred_check_branch
        %603 = sbr.rel (%p601) target = $region52
      $region51: #{aa_kernel_forward.7} parent=47 // pred_region
        %p604 = scmp.lt.s32.totalorder %s18, 1
        %s605 = scalar_select %p604, %s18, 1
        %s606 = smul.addr %s605, 8
        %s607 = smul.addr %s606, 8
        %s608 = scalar_lea.vmem %s5, %s607
      $region52: #{aa_kernel_forward.7} parent=47 // pred_fallthru
        _
    $region48: #{aa_kernel_forward.7} parent=5 // pred_fallthru
      _
  $region6: #{aa_kernel_forward.7} parent=0 // loop_footer
    %s16 = sadd.s32 1, %s12
  $region7: #{aa_kernel_forward.7} parent=0 // loop_footer_branch
    %11 = sbr.rel target = $region3
  $region8: #{aa_kernel_forward.7} parent=0 // loop_exit
    _

</llo_original>
